<compile_context>
chip_gen: v5e
topology: v5e:2x2
jax: 0.10.0
libtpu: 0.0.40
codegen_flags: <defaults>
</compile_context>

<pallas_src>
import jax
import jax.numpy as jnp
from jax import lax
from jax.experimental import pallas as pl
from jax.experimental.pallas import tpu as pltpu

EMBEDDING_DIM = 50


def _window_tagger_kernel(x_ref, t_ref, b1_ref, w2_ref, b2_ref, out_ref):
    """One batch tile: one-hot(MXU) folded embedding+Linear -> Tanh -> Linear -> Softmax."""
    tb = x_ref.shape[0]          # batch-tile rows (static)
    in_dim = x_ref.shape[1]      # window size (static, small)
    v_pad = t_ref.shape[1]       # padded vocab (static)
    hid_pad = t_ref.shape[2]     # padded hidden width (static)

    ids = x_ref[...]                                              # (tb, in_dim) int32
    col = lax.broadcasted_iota(jnp.int32, (tb, v_pad), 1)         # vocab-index lanes

    # Layer 1 (folded): sum over window positions of onehot @ T[w]; f32 accumulate.
    acc = jnp.zeros((tb, hid_pad), jnp.float32)
    for w in range(in_dim):                                       # tiny static unroll
        onehot = (ids[:, w:w + 1] == col).astype(jnp.bfloat16)    # (tb, v_pad)
        acc = acc + jnp.dot(onehot, t_ref[w],
                            preferred_element_type=jnp.float32)

    h = jnp.tanh(acc + b1_ref[...])                               # bias + Tanh in f32

    logits = jnp.dot(h.astype(jnp.bfloat16), w2_ref[...],
                     preferred_element_type=jnp.float32) + b2_ref[...]

    # Softmax over classes (PyTorch Softmax(dim=1) on [B, out_dim]).
    m = jnp.max(logits, axis=-1, keepdims=True)
    e = jnp.exp(logits - m)
    inv = pl.reciprocal(jnp.sum(e, axis=-1, keepdims=True), approx=True)
    out_ref[...] = e * inv


def window_tagger_forward(x, emb_table, w1, b1, w2, b2, *, tb=128):
    """Forward pass of WindowTagger (sub_word=False, cnn=False).

    x:         [B, in_dim] int32 token ids
    emb_table: [V, EMBEDDING_DIM] float32
    w1:        [in_dim*EMBEDDING_DIM, hid_dim] float32 (transposed PyTorch weight)
    b1:        [hid_dim] float32
    w2:        [hid_dim, out_dim] float32 (transposed PyTorch weight)
    b2:        [out_dim] float32
    returns:   [B, out_dim] float32 softmax probabilities
    """
    B, in_dim = x.shape
    V, E = emb_table.shape
    assert E == EMBEDDING_DIM
    feat, hid_dim = w1.shape
    assert feat == in_dim * E
    out_dim = w2.shape[1]

    v_pad = ((V + 127) // 128) * 128
    hid_pad = ((hid_dim + 127) // 128) * 128

    # Setup-time weight folding (batch-independent; cache across calls in real use):
    #   T[w] = emb_table @ W1[w*E:(w+1)*E, :]   so   emb(x).flatten @ W1 == sum_w onehot_w @ T[w]
    w1_r = w1.reshape(in_dim, E, hid_dim).astype(jnp.float32)
    t = jnp.einsum('ve,weh->wvh', emb_table.astype(jnp.float32), w1_r)     # (in_dim, V, hid)
    t_p = jnp.zeros((in_dim, v_pad, hid_pad), jnp.bfloat16
                    ).at[:, :V, :hid_dim].set(t.astype(jnp.bfloat16))
    b1_p = jnp.zeros((1, hid_pad), jnp.float32).at[0, :hid_dim].set(
        b1.astype(jnp.float32))
    w2_p = jnp.zeros((hid_pad, out_dim), jnp.bfloat16).at[:hid_dim, :].set(
        w2.astype(jnp.bfloat16))
    b2_p = b2.reshape(1, out_dim).astype(jnp.float32)

    tb = min(tb, B)
    nb = pl.cdiv(B, tb)

    grid_spec = pltpu.PrefetchScalarGridSpec(
        num_scalar_prefetch=0,
        grid=(nb,),
        in_specs=[
            pl.BlockSpec((tb, in_dim), lambda i: (i, 0)),               # token ids (VMEM)
            pl.BlockSpec((in_dim, v_pad, hid_pad), lambda i: (0, 0, 0)),  # folded table T
            pl.BlockSpec((1, hid_pad), lambda i: (0, 0)),               # b1
            pl.BlockSpec((hid_pad, out_dim), lambda i: (0, 0)),         # W2
            pl.BlockSpec((1, out_dim), lambda i: (0, 0)),               # b2
        ],
        out_specs=pl.BlockSpec((tb, out_dim), lambda i: (i, 0)),
    )

    return pl.pallas_call(
        _window_tagger_kernel,
        out_shape=jax.ShapeDtypeStruct((B, out_dim), jnp.float32),
        grid_spec=grid_spec,
        compiler_params=pltpu.CompilerParams(
            dimension_semantics=("parallel",),
        ),
    )(x.astype(jnp.int32), t_p, b1_p, w2_p, b2_p)


if __name__ == "__main__":
    # Deterministic synthetic parameters (no checkpoint / file loading).
    key = jax.random.PRNGKey(0)
    k_emb, k_w1, k_b1, k_w2, k_b2, k_x = jax.random.split(key, 6)

    vocab_size = 100
    in_dim = 5          # window size
    hid_dim = 32
    out_dim = 8
    B = 256             # 2 batch tiles of 128 -> exercises the grid / megacore

    emb_table = jax.random.normal(k_emb, (vocab_size, EMBEDDING_DIM), jnp.float32) * 0.1
    # PyTorch nn.Linear stores W as [out, in]; we pass the transpose so the kernel does x @ W.
    w1 = jax.random.normal(k_w1, (in_dim * EMBEDDING_DIM, hid_dim), jnp.float32) * 0.05
    b1 = jax.random.normal(k_b1, (hid_dim,), jnp.float32) * 0.05
    w2 = jax.random.normal(k_w2, (hid_dim, out_dim), jnp.float32) * 0.05
    b2 = jax.random.normal(k_b2, (out_dim,), jnp.float32) * 0.05

    x = jax.random.randint(k_x, (B, in_dim), 0, vocab_size, dtype=jnp.int32)

    probs = window_tagger_forward(x, emb_table, w1, b1, w2, b2, tb=128)
    probs = jax.block_until_ready(probs)

    # Sanity check vs pure-JAX f32 reference (kernel matmuls are bf16, so loose tol).
    emb_ref = jnp.take(emb_table, x, axis=0).reshape(B, in_dim * EMBEDDING_DIM)
    logits_ref = jnp.tanh(emb_ref @ w1 + b1) @ w2 + b2
    probs_ref = jax.nn.softmax(logits_ref, axis=1)

    assert probs.shape == (B, out_dim)
    max_err = float(jnp.max(jnp.abs(probs - probs_ref)))
    assert jnp.allclose(probs, probs_ref, atol=2e-2, rtol=2e-2), max_err
    assert jnp.allclose(jnp.sum(probs, axis=1), 1.0, atol=5e-3)

    print("KERNEL_OK")
</pallas_src>

<mosaic_0001>
module attributes {stable_mosaic.version = 11 : i64} {
  func.func @_window_tagger_kernel(%arg0: i32, %arg1: memref<128x5xi32, #tpu.memory_space<vmem>>, %arg2: memref<5x128x128xbf16, #tpu.memory_space<vmem>>, %arg3: memref<1x128xf32, #tpu.memory_space<vmem>>, %arg4: memref<128x8xbf16, #tpu.memory_space<vmem>>, %arg5: memref<1x8xf32, #tpu.memory_space<vmem>>, %arg6: memref<128x8xf32, #tpu.memory_space<vmem>>) attributes {dimension_semantics = [#tpu.dimension_semantics<parallel>], iteration_bounds = array<i64: 2>, scalar_prefetch = 0 : i64, scratch_operands = 0 : i64, tpu.core_type = #tpu.core_type<tc>, window_params = [{transform_indices = @transform_0, window_bounds = array<i64: 128, 5>}, {pipeline_mode = #tpu.pipeline_mode<synchronous>, transform_indices = @transform_1, window_bounds = array<i64: 5, 128, 128>}, {pipeline_mode = #tpu.pipeline_mode<synchronous>, transform_indices = @transform_2, window_bounds = array<i64: 1, 128>}, {pipeline_mode = #tpu.pipeline_mode<synchronous>, transform_indices = @transform_3, window_bounds = array<i64: 128, 8>}, {pipeline_mode = #tpu.pipeline_mode<synchronous>, transform_indices = @transform_4, window_bounds = array<i64: 1, 8>}, {transform_indices = @transform_5, window_bounds = array<i64: 128, 8>}]} {
    %c0 = arith.constant 0 : index
    %c0_0 = arith.constant 0 : index
    %0 = vector.load %arg1[%c0, %c0_0] : memref<128x5xi32, #tpu.memory_space<vmem>>, vector<128x5xi32>
    %1 = tpu.iota {dimensions = array<i32: 1>} : vector<128x128xi32>
    %cst = arith.constant 0.000000e+00 : f32
    %2 = vector.broadcast %cst : f32 to vector<128x128xf32>
    %3 = vector.extract_strided_slice %0 {offsets = [0, 0], sizes = [128, 1], strides = [1, 1]} : vector<128x5xi32> to vector<128x1xi32>
    %4 = vector.broadcast %3 : vector<128x1xi32> to vector<128x128xi32>
    %5 = arith.cmpi eq, %4, %1 : vector<128x128xi32>
    %6 = arith.extui %5 : vector<128x128xi1> to vector<128x128xi32>
    %7 = arith.sitofp %6 : vector<128x128xi32> to vector<128x128xf32>
    %8 = arith.truncf %7 : vector<128x128xf32> to vector<128x128xbf16>
    %c0_1 = arith.constant 0 : index
    %c0_2 = arith.constant 0 : index
    %c0_3 = arith.constant 0 : index
    %9 = vector.load %arg2[%c0_1, %c0_2, %c0_3] : memref<5x128x128xbf16, #tpu.memory_space<vmem>>, vector<1x128x128xbf16>
    %10 = vector.shape_cast %9 : vector<1x128x128xbf16> to vector<128x128xbf16>
    %cst_4 = arith.constant dense<0.000000e+00> : vector<128x128xf32>
    %11 = tpu.matmul %8, %10, %cst_4 {dimension_numbers = #tpu.dot_dimension_numbers<[1], [0], [0], [1], [0, 0, 1, 1], [], []>} : vector<128x128xbf16>, vector<128x128xbf16>, vector<128x128xf32> -> vector<128x128xf32>
    %12 = arith.addf %2, %11 : vector<128x128xf32>
    %13 = vector.extract_strided_slice %0 {offsets = [0, 1], sizes = [128, 1], strides = [1, 1]} : vector<128x5xi32> to vector<128x1xi32>
    %14 = vector.broadcast %13 : vector<128x1xi32> to vector<128x128xi32>
    %15 = arith.cmpi eq, %14, %1 : vector<128x128xi32>
    %16 = arith.extui %15 : vector<128x128xi1> to vector<128x128xi32>
    %17 = arith.sitofp %16 : vector<128x128xi32> to vector<128x128xf32>
    %18 = arith.truncf %17 : vector<128x128xf32> to vector<128x128xbf16>
    %c1 = arith.constant 1 : index
    %c0_5 = arith.constant 0 : index
    %c0_6 = arith.constant 0 : index
    %19 = vector.load %arg2[%c1, %c0_5, %c0_6] : memref<5x128x128xbf16, #tpu.memory_space<vmem>>, vector<1x128x128xbf16>
    %20 = vector.shape_cast %19 : vector<1x128x128xbf16> to vector<128x128xbf16>
    %cst_7 = arith.constant dense<0.000000e+00> : vector<128x128xf32>
    %21 = tpu.matmul %18, %20, %cst_7 {dimension_numbers = #tpu.dot_dimension_numbers<[1], [0], [0], [1], [0, 0, 1, 1], [], []>} : vector<128x128xbf16>, vector<128x128xbf16>, vector<128x128xf32> -> vector<128x128xf32>
    %22 = arith.addf %12, %21 : vector<128x128xf32>
    %23 = vector.extract_strided_slice %0 {offsets = [0, 2], sizes = [128, 1], strides = [1, 1]} : vector<128x5xi32> to vector<128x1xi32>
    %24 = vector.broadcast %23 : vector<128x1xi32> to vector<128x128xi32>
    %25 = arith.cmpi eq, %24, %1 : vector<128x128xi32>
    %26 = arith.extui %25 : vector<128x128xi1> to vector<128x128xi32>
    %27 = arith.sitofp %26 : vector<128x128xi32> to vector<128x128xf32>
    %28 = arith.truncf %27 : vector<128x128xf32> to vector<128x128xbf16>
    %c2 = arith.constant 2 : index
    %c0_8 = arith.constant 0 : index
    %c0_9 = arith.constant 0 : index
    %29 = vector.load %arg2[%c2, %c0_8, %c0_9] : memref<5x128x128xbf16, #tpu.memory_space<vmem>>, vector<1x128x128xbf16>
    %30 = vector.shape_cast %29 : vector<1x128x128xbf16> to vector<128x128xbf16>
    %cst_10 = arith.constant dense<0.000000e+00> : vector<128x128xf32>
    %31 = tpu.matmul %28, %30, %cst_10 {dimension_numbers = #tpu.dot_dimension_numbers<[1], [0], [0], [1], [0, 0, 1, 1], [], []>} : vector<128x128xbf16>, vector<128x128xbf16>, vector<128x128xf32> -> vector<128x128xf32>
    %32 = arith.addf %22, %31 : vector<128x128xf32>
    %33 = vector.extract_strided_slice %0 {offsets = [0, 3], sizes = [128, 1], strides = [1, 1]} : vector<128x5xi32> to vector<128x1xi32>
    %34 = vector.broadcast %33 : vector<128x1xi32> to vector<128x128xi32>
    %35 = arith.cmpi eq, %34, %1 : vector<128x128xi32>
    %36 = arith.extui %35 : vector<128x128xi1> to vector<128x128xi32>
    %37 = arith.sitofp %36 : vector<128x128xi32> to vector<128x128xf32>
    %38 = arith.truncf %37 : vector<128x128xf32> to vector<128x128xbf16>
    %c3 = arith.constant 3 : index
    %c0_11 = arith.constant 0 : index
    %c0_12 = arith.constant 0 : index
    %39 = vector.load %arg2[%c3, %c0_11, %c0_12] : memref<5x128x128xbf16, #tpu.memory_space<vmem>>, vector<1x128x128xbf16>
    %40 = vector.shape_cast %39 : vector<1x128x128xbf16> to vector<128x128xbf16>
    %cst_13 = arith.constant dense<0.000000e+00> : vector<128x128xf32>
    %41 = tpu.matmul %38, %40, %cst_13 {dimension_numbers = #tpu.dot_dimension_numbers<[1], [0], [0], [1], [0, 0, 1, 1], [], []>} : vector<128x128xbf16>, vector<128x128xbf16>, vector<128x128xf32> -> vector<128x128xf32>
    %42 = arith.addf %32, %41 : vector<128x128xf32>
    %43 = vector.extract_strided_slice %0 {offsets = [0, 4], sizes = [128, 1], strides = [1, 1]} : vector<128x5xi32> to vector<128x1xi32>
    %44 = vector.broadcast %43 : vector<128x1xi32> to vector<128x128xi32>
    %45 = arith.cmpi eq, %44, %1 : vector<128x128xi32>
    %46 = arith.extui %45 : vector<128x128xi1> to vector<128x128xi32>
    %47 = arith.sitofp %46 : vector<128x128xi32> to vector<128x128xf32>
    %48 = arith.truncf %47 : vector<128x128xf32> to vector<128x128xbf16>
    %c4 = arith.constant 4 : index
    %c0_14 = arith.constant 0 : index
    %c0_15 = arith.constant 0 : index
    %49 = vector.load %arg2[%c4, %c0_14, %c0_15] : memref<5x128x128xbf16, #tpu.memory_space<vmem>>, vector<1x128x128xbf16>
    %50 = vector.shape_cast %49 : vector<1x128x128xbf16> to vector<128x128xbf16>
    %cst_16 = arith.constant dense<0.000000e+00> : vector<128x128xf32>
    %51 = tpu.matmul %48, %50, %cst_16 {dimension_numbers = #tpu.dot_dimension_numbers<[1], [0], [0], [1], [0, 0, 1, 1], [], []>} : vector<128x128xbf16>, vector<128x128xbf16>, vector<128x128xf32> -> vector<128x128xf32>
    %52 = arith.addf %42, %51 : vector<128x128xf32>
    %c0_17 = arith.constant 0 : index
    %c0_18 = arith.constant 0 : index
    %53 = vector.load %arg3[%c0_17, %c0_18] : memref<1x128xf32, #tpu.memory_space<vmem>>, vector<1x128xf32>
    %54 = vector.broadcast %53 : vector<1x128xf32> to vector<128x128xf32>
    %55 = arith.addf %52, %54 : vector<128x128xf32>
    %56 = math.tanh %55 : vector<128x128xf32>
    %57 = arith.truncf %56 : vector<128x128xf32> to vector<128x128xbf16>
    %c0_19 = arith.constant 0 : index
    %c0_20 = arith.constant 0 : index
    %58 = vector.load %arg4[%c0_19, %c0_20] : memref<128x8xbf16, #tpu.memory_space<vmem>>, vector<128x8xbf16>
    %cst_21 = arith.constant dense<0.000000e+00> : vector<128x8xf32>
    %59 = tpu.matmul %57, %58, %cst_21 {dimension_numbers = #tpu.dot_dimension_numbers<[1], [0], [0], [1], [0, 0, 1, 1], [], []>} : vector<128x128xbf16>, vector<128x8xbf16>, vector<128x8xf32> -> vector<128x8xf32>
    %c0_22 = arith.constant 0 : index
    %c0_23 = arith.constant 0 : index
    %60 = vector.load %arg5[%c0_22, %c0_23] : memref<1x8xf32, #tpu.memory_space<vmem>>, vector<1x8xf32>
    %61 = vector.broadcast %60 : vector<1x8xf32> to vector<128x8xf32>
    %62 = arith.addf %59, %61 : vector<128x8xf32>
    %cst_24 = arith.constant dense<0xFF800000> : vector<128xf32>
    %63 = vector.multi_reduction <maximumf>, %62, %cst_24 [1] : vector<128x8xf32> to vector<128xf32>
    %64 = vector.shape_cast %63 : vector<128xf32> to vector<128x1xf32>
    %65 = vector.broadcast %64 : vector<128x1xf32> to vector<128x8xf32>
    %66 = arith.subf %62, %65 : vector<128x8xf32>
    %67 = math.exp %66 : vector<128x8xf32>
    %cst_25 = arith.constant dense<0.000000e+00> : vector<128xf32>
    %68 = vector.multi_reduction <add>, %67, %cst_25 [1] : vector<128x8xf32> to vector<128xf32>
    %69 = vector.shape_cast %68 : vector<128xf32> to vector<128x1xf32>
    %70 = tpu.reciprocal %69 {approx = true} : vector<128x1xf32> -> vector<128x1xf32>
    %71 = vector.broadcast %70 : vector<128x1xf32> to vector<128x8xf32>
    %72 = arith.mulf %67, %71 : vector<128x8xf32>
    %c0_26 = arith.constant 0 : index
    %c0_27 = arith.constant 0 : index
    %73 = vector.load %arg6[%c0_26, %c0_27] : memref<128x8xf32, #tpu.memory_space<vmem>>, vector<128x8xf32>
    tpu.vector_store %arg6[%c0_26, %c0_27], %72 {strides = array<i32>} : memref<128x8xf32, #tpu.memory_space<vmem>>, vector<128x8xf32>,
    return
  }
  func.func @transform_0(%arg0: i32) -> (i32, i32) {
    %c0_i32 = arith.constant 0 : i32
    %c0_i32_0 = arith.constant 0 : i32
    return %arg0, %c0_i32 : i32, i32
  }
  func.func @transform_1(%arg0: i32) -> (i32, i32, i32) {
    %c0_i32 = arith.constant 0 : i32
    %c0_i32_0 = arith.constant 0 : i32
    %c0_i32_1 = arith.constant 0 : i32
    %c0_i32_2 = arith.constant 0 : i32
    return %c0_i32, %c0_i32_0, %c0_i32_1 : i32, i32, i32
  }
  func.func @transform_2(%arg0: i32) -> (i32, i32) {
    %c0_i32 = arith.constant 0 : i32
    %c0_i32_0 = arith.constant 0 : i32
    %c0_i32_1 = arith.constant 0 : i32
    return %c0_i32, %c0_i32_0 : i32, i32
  }
  func.func @transform_3(%arg0: i32) -> (i32, i32) {
    %c0_i32 = arith.constant 0 : i32
    %c0_i32_0 = arith.constant 0 : i32
    %c0_i32_1 = arith.constant 0 : i32
    return %c0_i32, %c0_i32_0 : i32, i32
  }
  func.func @transform_4(%arg0: i32) -> (i32, i32) {
    %c0_i32 = arith.constant 0 : i32
    %c0_i32_0 = arith.constant 0 : i32
    %c0_i32_1 = arith.constant 0 : i32
    return %c0_i32, %c0_i32_0 : i32, i32
  }
  func.func @transform_5(%arg0: i32) -> (i32, i32) {
    %c0_i32 = arith.constant 0 : i32
    %c0_i32_0 = arith.constant 0 : i32
    return %arg0, %c0_i32 : i32, i32
  }
}

</mosaic_0001>

<llo_original>
// kernel: tpu_custom_call.1
$region0: #{tpu_custom_call.1}
  #allocation0 [shape = 'u32[]', space=smem, size = 0x4, offset = 0x4, fixed_abs, tag = 'smem constant byte address 0x4 - core index']
  #allocation1 [shape = 'u32[72,128]{1,0:T(1,128)}', space=vmem, size = 0x9000, scoped, tag = 'internal scratch']
  %s0 = inlined_call_operand.vmem [shape: s32[256,5], index: 0, kind: input, shape index: {}]
  %s1 = inlined_call_operand.vmem [shape: bf16[5,128,128], index: 1, kind: input, shape index: {}]
  %s2 = inlined_call_operand.vmem [shape: f32[1,128], index: 2, kind: input, shape index: {}]
  %s3 = inlined_call_operand.vmem [shape: bf16[128,8], index: 3, kind: input, shape index: {}]
  %s4 = inlined_call_operand.vmem [shape: f32[1,8], index: 4, kind: input, shape index: {}]
  %s5 = inlined_call_operand.vmem [shape: f32[256,8], index: 5, kind: output, shape index: {}]
  %s6 = sld [smem:[#allocation0]]
  $region53: #{tpu_custom_call.1} parent=0
    _
  %s8 = ssub.s32 1, %s6
  %s9 = scalar_select 0, %s8, %s6
  loop: start=0, step=1, limit=4
  $region2: #{tpu_custom_call.1} parent=0 // loop_pre_header
    _
  $region3: #{tpu_custom_call.1} parent=0 // loop_header
    %s11 = sphi 0, %s15
    %p12 = scmp.ge.s32.totalorder %s11, 4
    %s21 = sphi 0, %s23
    %s24 = sphi 0, %s21
    %s25 = sphi 0, %s24
    %s41 = sphi 0, %s25
    %s45 = sphi 0, %s45
    %s47 = sphi 0, %s45
    %s48 = sphi 0, %s47
    %s62 = sphi 0, %s48
    %s66 = sphi 0, %s66
    %s68 = sphi 0, %s66
    %s69 = sphi 0, %s68
    %s83 = sphi 0, %s69
    %s87 = sphi 0, %s87
    %s89 = sphi 0, %s87
    %s90 = sphi 0, %s89
    %s104 = sphi 0, %s90
    %s108 = sphi 0, %s108
    %s110 = sphi 0, %s108
    %s111 = sphi 0, %s110
    %s125 = sphi 0, %s111
    %s131 = sphi 0, %s133
    %s134 = sphi 0, %s131
    %s135 = sphi 0, %s134
    %s151 = sphi 0, %s135
  $region4: #{tpu_custom_call.1} parent=0 // loop_header_branch
    %14 = sbr.rel (%p12) target = $region8
  $region5: #{tpu_custom_call.1} parent=0 // loop_body
    %s16 = ssub.s32 %s11, 1
    %s17 = ssub.s32 %s11, 2
    %s18 = sadd.s32 %s11, 1
    %s19 = ssub.s32 %s11, %s18
    %p20 = scmp.eq.s32.totalorder %s19, 0
    %s22 = sadd.s32 %s21, 1
    %s23 = scalar_select %p20, %s21, %s22
    %p26 = pneg %p20
    %p27 = scmp.eq.s32.totalorder %s11, 1
    %p28 = por %p26, %p27
    %p29 = scmp.ne.s32.totalorder %s21, %s24
    %p30 = scmp.eq.s32.totalorder %s11, 0
    %p31 = por %p29, %p30
    %p32 = scmp.ne.s32.totalorder %s21, %s24
    %p33 = scmp.eq.s32.totalorder %s16, 1
    %p34 = por %p32, %p33
    %p35 = scmp.ne.s32.totalorder %s24, %s25
    %p36 = scmp.eq.s32.totalorder %s16, 0
    %p37 = por %p35, %p36
    %p38 = scmp.ne.s32.totalorder %s24, %s25
    %p39 = scmp.eq.s32.totalorder %s17, 1
    %p40 = por %p38, %p39
    %p42 = scmp.ne.s32.totalorder %s25, %s41
    %p43 = scmp.eq.s32.totalorder %s17, 0
    %p44 = por %p42, %p43
    %s46 = sadd.s32 %s45, 1
    %p49 = scmp.eq.s32.totalorder %s11, 1
    %p50 = scmp.ne.s32.totalorder %s45, %s47
    %p51 = scmp.eq.s32.totalorder %s11, 0
    %p52 = por %p50, %p51
    %p53 = scmp.ne.s32.totalorder %s45, %s47
    %p54 = scmp.eq.s32.totalorder %s16, 1
    %p55 = por %p53, %p54
    %p56 = scmp.ne.s32.totalorder %s47, %s48
    %p57 = scmp.eq.s32.totalorder %s16, 0
    %p58 = por %p56, %p57
    %p59 = scmp.ne.s32.totalorder %s47, %s48
    %p60 = scmp.eq.s32.totalorder %s17, 1
    %p61 = por %p59, %p60
    %p63 = scmp.ne.s32.totalorder %s48, %s62
    %p64 = scmp.eq.s32.totalorder %s17, 0
    %p65 = por %p63, %p64
    %s67 = sadd.s32 %s66, 1
    %p70 = scmp.eq.s32.totalorder %s11, 1
    %p71 = scmp.ne.s32.totalorder %s66, %s68
    %p72 = scmp.eq.s32.totalorder %s11, 0
    %p73 = por %p71, %p72
    %p74 = scmp.ne.s32.totalorder %s66, %s68
    %p75 = scmp.eq.s32.totalorder %s16, 1
    %p76 = por %p74, %p75
    %p77 = scmp.ne.s32.totalorder %s68, %s69
    %p78 = scmp.eq.s32.totalorder %s16, 0
    %p79 = por %p77, %p78
    %p80 = scmp.ne.s32.totalorder %s68, %s69
    %p81 = scmp.eq.s32.totalorder %s17, 1
    %p82 = por %p80, %p81
    %p84 = scmp.ne.s32.totalorder %s69, %s83
    %p85 = scmp.eq.s32.totalorder %s17, 0
    %p86 = por %p84, %p85
    %s88 = sadd.s32 %s87, 1
    %p91 = scmp.eq.s32.totalorder %s11, 1
    %p92 = scmp.ne.s32.totalorder %s87, %s89
    %p93 = scmp.eq.s32.totalorder %s11, 0
    %p94 = por %p92, %p93
    %p95 = scmp.ne.s32.totalorder %s87, %s89
    %p96 = scmp.eq.s32.totalorder %s16, 1
    %p97 = por %p95, %p96
    %p98 = scmp.ne.s32.totalorder %s89, %s90
    %p99 = scmp.eq.s32.totalorder %s16, 0
    %p100 = por %p98, %p99
    %p101 = scmp.ne.s32.totalorder %s89, %s90
    %p102 = scmp.eq.s32.totalorder %s17, 1
    %p103 = por %p101, %p102
    %p105 = scmp.ne.s32.totalorder %s90, %s104
    %p106 = scmp.eq.s32.totalorder %s17, 0
    %p107 = por %p105, %p106
    %s109 = sadd.s32 %s108, 1
    %p112 = scmp.eq.s32.totalorder %s11, 1
    %p113 = scmp.ne.s32.totalorder %s108, %s110
    %p114 = scmp.eq.s32.totalorder %s11, 0
    %p115 = por %p113, %p114
    %p116 = scmp.ne.s32.totalorder %s108, %s110
    %p117 = scmp.eq.s32.totalorder %s16, 1
    %p118 = por %p116, %p117
    %p119 = scmp.ne.s32.totalorder %s110, %s111
    %p120 = scmp.eq.s32.totalorder %s16, 0
    %p121 = por %p119, %p120
    %p122 = scmp.ne.s32.totalorder %s110, %s111
    %p123 = scmp.eq.s32.totalorder %s17, 1
    %p124 = por %p122, %p123
    %p126 = scmp.ne.s32.totalorder %s111, %s125
    %p127 = scmp.eq.s32.totalorder %s17, 0
    %p128 = por %p126, %p127
    %s129 = ssub.s32 %s11, %s18
    %p130 = scmp.eq.s32.totalorder %s129, 0
    %s132 = sadd.s32 %s131, 1
    %s133 = scalar_select %p130, %s131, %s132
    %p136 = pneg %p130
    %p137 = scmp.eq.s32.totalorder %s11, 1
    %p138 = por %p136, %p137
    %p139 = scmp.ne.s32.totalorder %s131, %s134
    %p140 = scmp.eq.s32.totalorder %s11, 0
    %p141 = por %p139, %p140
    %p142 = scmp.ne.s32.totalorder %s131, %s134
    %p143 = scmp.eq.s32.totalorder %s16, 1
    %p144 = por %p142, %p143
    %p145 = scmp.ne.s32.totalorder %s134, %s135
    %p146 = scmp.eq.s32.totalorder %s16, 0
    %p147 = por %p145, %p146
    %p148 = scmp.ne.s32.totalorder %s134, %s135
    %p149 = scmp.eq.s32.totalorder %s17, 1
    %p150 = por %p148, %p149
    %p152 = scmp.ne.s32.totalorder %s135, %s151
    %p153 = scmp.eq.s32.totalorder %s17, 0
    %p154 = por %p152, %p153
    %p155 = scmp.le.s32.totalorder 1, %s11
    %p156 = scmp.lt.s32.totalorder %s11, 3
    %p157 = pnand %p155, %p156
    %p158 = pneg %p157
    // Predicated region
    $region9: #{tpu_custom_call.1} parent=5 // pred_check
      _
    $region10: #{tpu_custom_call.1} parent=5 // pred_check_branch
      %160 = sbr.rel (%p157) target = $region12
    $region11: #{tpu_custom_call.1} parent=5 // pred_region
      %s161 = ssub.s32 %s11, 1
      // Predicated region
      $region13: #{tpu_custom_call.1} parent=11 // pred_check
        %p162 = pneg %p58
      $region14: #{tpu_custom_call.1} parent=11 // pred_check_branch
        %164 = sbr.rel (%p162) target = $region16
      $region15: #{tpu_custom_call.1} parent=11 // pred_region
        _
      $region16: #{tpu_custom_call.1} parent=11 // pred_fallthru
        _
      // Predicated region
      $region17: #{tpu_custom_call.1} parent=11 // pred_check
        %p165 = pneg %p79
      $region18: #{tpu_custom_call.1} parent=11 // pred_check_branch
        %167 = sbr.rel (%p165) target = $region20
      $region19: #{tpu_custom_call.1} parent=11 // pred_region
        _
      $region20: #{tpu_custom_call.1} parent=11 // pred_fallthru
        _
      // Predicated region
      $region21: #{tpu_custom_call.1} parent=11 // pred_check
        %p168 = pneg %p100
      $region22: #{tpu_custom_call.1} parent=11 // pred_check_branch
        %170 = sbr.rel (%p168) target = $region24
      $region23: #{tpu_custom_call.1} parent=11 // pred_region
        _
      $region24: #{tpu_custom_call.1} parent=11 // pred_fallthru
        _
      // Predicated region
      $region25: #{tpu_custom_call.1} parent=11 // pred_check
        %p171 = pneg %p121
      $region26: #{tpu_custom_call.1} parent=11 // pred_check_branch
        %173 = sbr.rel (%p171) target = $region28
      $region27: #{tpu_custom_call.1} parent=11 // pred_region
        _
      $region28: #{tpu_custom_call.1} parent=11 // pred_fallthru
        _
    $region12: #{tpu_custom_call.1} parent=5 // pred_fallthru
      _
    %p174 = scmp.lt.s32.totalorder %s11, 2
    // Predicated region
    $region29: #{tpu_custom_call.1} parent=5 // pred_check
      %p175 = pneg %p174
    $region30: #{tpu_custom_call.1} parent=5 // pred_check_branch
      %177 = sbr.rel (%p175) target = $region32
    $region31: #{tpu_custom_call.1} parent=5 // pred_region
      // Predicated region
      $region33: #{tpu_custom_call.1} parent=31 // pred_check
        %p178 = pneg %p31
      $region34: #{tpu_custom_call.1} parent=31 // pred_check_branch
        %180 = sbr.rel (%p178) target = $region36
      $region35: #{tpu_custom_call.1} parent=31 // pred_region
        %s181 = smul.u32 16, %s11
        %p182 = scmp.lt.s32.totalorder %s181, 31
        %s183 = scalar_select %p182, %s181, 31
        %s184 = smul.addr %s183, 8
        %s185 = scalar_lea.vmem %s0, %s184
        %s186 = smul.u32 16, %s11
      $region36: #{tpu_custom_call.1} parent=31 // pred_fallthru
        _
    $region32: #{tpu_custom_call.1} parent=5 // pred_fallthru
      _
    %p187 = scmp.le.s32.totalorder 1, %s11
    %p188 = scmp.lt.s32.totalorder %s11, 3
    %p189 = pnand %p187, %p188
    %p190 = pneg %p189
    // Predicated region
    $region37: #{tpu_custom_call.1} parent=5 // pred_check
      _
    $region38: #{tpu_custom_call.1} parent=5 // pred_check_branch
      %192 = sbr.rel (%p189) target = $region40
    $region39: #{tpu_custom_call.1} parent=5 // pred_region
      %s193 = ssub.s32 %s11, 1
      %s194 = smul.u32 16, %s16
      %p195 = scmp.lt.s32.totalorder %s194, 31
      %s196 = scalar_select %p195, %s194, 31
      %s197 = smul.addr %s196, 8
      %s198 = scalar_lea.vmem %s0, %s197
      %p199 = pneg %p37
      %p200 = pneg %p34
      %p201 = pneg %p58
      %p202 = pneg %p55
      %p203 = pneg %p79
      %p204 = pneg %p76
      %p205 = pneg %p100
      %p206 = pneg %p97
      %p207 = pneg %p121
      %p208 = pneg %p118
      %p209 = pneg %p147
      %p210 = pneg %p144
      %s211 = smul.u32 16, %s16
      %p212 = scmp.lt.s32.totalorder %s211, 31
      %s213 = scalar_select %p212, %s211, 31
      %s214 = smul.addr %s213, 8
      %s215 = scalar_lea.vmem %s5, %s214
      %s216 = smul.u32 16, %s16
      %p217 = scmp.lt.s32.totalorder %s216, 31
      %s218 = scalar_select %p217, %s216, 31
      %s219 = smul.addr %s218, 8
      %s220 = scalar_lea.vmem %s0, %s219
      %s221 = smul.u32 16, %s16
      %s222 = smul.u32 16, %s16
      %p223 = scmp.lt.s32.totalorder %s222, 31
      %s224 = scalar_select %p223, %s222, 31
      %s225 = smul.addr %s224, 8
      %s226 = scalar_lea.vmem %s5, %s225
      %s227 = smul.u32 16, %s16
      %v228 = vld [vmem:[%s220] sm:$0xff]
      %v229 = vld [vmem:[%s220 + $0x8] sm:$0xff]
      %v230 = vld [vmem:[%s220 + $0x10] sm:$0xff]
      %v231 = vld [vmem:[%s220 + $0x18] sm:$0xff]
      %v232 = vld [vmem:[%s220 + $0x20] sm:$0xff]
      %v233 = vld [vmem:[%s220 + $0x28] sm:$0xff]
      %v234 = vld [vmem:[%s220 + $0x30] sm:$0xff]
      %v235 = vld [vmem:[%s220 + $0x38] sm:$0xff]
      %v236 = vld [vmem:[%s220 + $0x40] sm:$0xff]
      %v237 = vld [vmem:[%s220 + $0x48] sm:$0xff]
      %v238 = vld [vmem:[%s220 + $0x50] sm:$0xff]
      %v239 = vld [vmem:[%s220 + $0x58] sm:$0xff]
      %v240 = vld [vmem:[%s220 + $0x60] sm:$0xff]
      %v241 = vld [vmem:[%s220 + $0x68] sm:$0xff]
      %v242 = vld [vmem:[%s220 + $0x70] sm:$0xff]
      %v243 = vld [vmem:[%s220 + $0x78] sm:$0xff]
      %v244 = vlaneseq
      %v245 = vand.u32 %v244, 127
      %246 = vset.pattern.permute.xlu0 0
      %247 = vperm.xlu0 %246, %v228
      %v248 = vpop.permute.xlu0 %247
      %249 = vset.pattern.permute.xlu0 0
      %250 = vperm.xlu0 %249, %v229
      %v251 = vpop.permute.xlu0 %250
      %252 = vset.pattern.permute.xlu0 0
      %253 = vperm.xlu0 %252, %v230
      %v254 = vpop.permute.xlu0 %253
      %255 = vset.pattern.permute.xlu0 0
      %256 = vperm.xlu0 %255, %v231
      %v257 = vpop.permute.xlu0 %256
      %258 = vset.pattern.permute.xlu0 0
      %259 = vperm.xlu0 %258, %v232
      %v260 = vpop.permute.xlu0 %259
      %261 = vset.pattern.permute.xlu0 0
      %262 = vperm.xlu0 %261, %v233
      %v263 = vpop.permute.xlu0 %262
      %264 = vset.pattern.permute.xlu0 0
      %265 = vperm.xlu0 %264, %v234
      %v266 = vpop.permute.xlu0 %265
      %267 = vset.pattern.permute.xlu0 0
      %268 = vperm.xlu0 %267, %v235
      %v269 = vpop.permute.xlu0 %268
      %270 = vset.pattern.permute.xlu0 0
      %271 = vperm.xlu0 %270, %v236
      %v272 = vpop.permute.xlu0 %271
      %273 = vset.pattern.permute.xlu0 0
      %274 = vperm.xlu0 %273, %v237
      %v275 = vpop.permute.xlu0 %274
      %276 = vset.pattern.permute.xlu0 0
      %277 = vperm.xlu0 %276, %v238
      %v278 = vpop.permute.xlu0 %277
      %279 = vset.pattern.permute.xlu0 0
      %280 = vperm.xlu0 %279, %v239
      %v281 = vpop.permute.xlu0 %280
      %282 = vset.pattern.permute.xlu0 0
      %283 = vperm.xlu0 %282, %v240
      %v284 = vpop.permute.xlu0 %283
      %285 = vset.pattern.permute.xlu0 0
      %286 = vperm.xlu0 %285, %v241
      %v287 = vpop.permute.xlu0 %286
      %288 = vset.pattern.permute.xlu0 0
      %289 = vperm.xlu0 %288, %v242
      %v290 = vpop.permute.xlu0 %289
      %291 = vset.pattern.permute.xlu0 0
      %292 = vperm.xlu0 %291, %v243
      %v293 = vpop.permute.xlu0 %292
      %vm294 = vcmp.eq.s32.totalorder %v248, %v245
      %vm295 = vcmp.eq.s32.totalorder %v251, %v245
      %vm296 = vcmp.eq.s32.totalorder %v254, %v245
      %vm297 = vcmp.eq.s32.totalorder %v257, %v245
      %vm298 = vcmp.eq.s32.totalorder %v260, %v245
      %vm299 = vcmp.eq.s32.totalorder %v263, %v245
      %vm300 = vcmp.eq.s32.totalorder %v266, %v245
      %vm301 = vcmp.eq.s32.totalorder %v269, %v245
      %vm302 = vcmp.eq.s32.totalorder %v272, %v245
      %vm303 = vcmp.eq.s32.totalorder %v275, %v245
      %vm304 = vcmp.eq.s32.totalorder %v278, %v245
      %vm305 = vcmp.eq.s32.totalorder %v281, %v245
      %vm306 = vcmp.eq.s32.totalorder %v284, %v245
      %vm307 = vcmp.eq.s32.totalorder %v287, %v245
      %vm308 = vcmp.eq.s32.totalorder %v290, %v245
      %vm309 = vcmp.eq.s32.totalorder %v293, %v245
      %v310 = vsel %vm294, 1, 0
      %v311 = vsel %vm295, 1, 0
      %v312 = vsel %vm296, 1, 0
      %v313 = vsel %vm297, 1, 0
      %v314 = vsel %vm298, 1, 0
      %v315 = vsel %vm299, 1, 0
      %v316 = vsel %vm300, 1, 0
      %v317 = vsel %vm301, 1, 0
      %v318 = vsel %vm302, 1, 0
      %v319 = vsel %vm303, 1, 0
      %v320 = vsel %vm304, 1, 0
      %v321 = vsel %vm305, 1, 0
      %v322 = vsel %vm306, 1, 0
      %v323 = vsel %vm307, 1, 0
      %v324 = vsel %vm308, 1, 0
      %v325 = vsel %vm309, 1, 0
      %v326 = vcvt.s32.f32 %v310
      %v327 = vcvt.s32.f32 %v311
      %v328 = vcvt.s32.f32 %v312
      %v329 = vcvt.s32.f32 %v313
      %v330 = vcvt.s32.f32 %v314
      %v331 = vcvt.s32.f32 %v315
      %v332 = vcvt.s32.f32 %v316
      %v333 = vcvt.s32.f32 %v317
      %v334 = vcvt.s32.f32 %v318
      %v335 = vcvt.s32.f32 %v319
      %v336 = vcvt.s32.f32 %v320
      %v337 = vcvt.s32.f32 %v321
      %v338 = vcvt.s32.f32 %v322
      %v339 = vcvt.s32.f32 %v323
      %v340 = vcvt.s32.f32 %v324
      %v341 = vcvt.s32.f32 %v325
      %v342 = vpack.c.bf16 %v327, %v326
      %v343 = vpack.c.bf16 %v329, %v328
      %v344 = vpack.c.bf16 %v331, %v330
      %v345 = vpack.c.bf16 %v333, %v332
      %v346 = vpack.c.bf16 %v335, %v334
      %v347 = vpack.c.bf16 %v337, %v336
      %v348 = vpack.c.bf16 %v339, %v338
      %v349 = vpack.c.bf16 %v341, %v340
      %v350 = vld [vmem:[%s1] sm:$0xf]
      %v351 = vld [vmem:[%s1 + $0x4] sm:$0xf]
      %v352 = vld [vmem:[%s1 + $0x8] sm:$0xf]
      %v353 = vld [vmem:[%s1 + $0xc] sm:$0xf]
      %v354 = vld [vmem:[%s1 + $0x10] sm:$0xf]
      %v355 = vld [vmem:[%s1 + $0x14] sm:$0xf]
      %v356 = vld [vmem:[%s1 + $0x18] sm:$0xf]
      %v357 = vld [vmem:[%s1 + $0x1c] sm:$0xf]
      %v358 = vld [vmem:[%s1 + $0x20] sm:$0xf]
      %v359 = vld [vmem:[%s1 + $0x24] sm:$0xf]
      %v360 = vld [vmem:[%s1 + $0x28] sm:$0xf]
      %v361 = vld [vmem:[%s1 + $0x2c] sm:$0xf]
      %v362 = vld [vmem:[%s1 + $0x30] sm:$0xf]
      %v363 = vld [vmem:[%s1 + $0x34] sm:$0xf]
      %v364 = vld [vmem:[%s1 + $0x38] sm:$0xf]
      %v365 = vld [vmem:[%s1 + $0x3c] sm:$0xf]
      %366 = vset.pattern.permute.xlu0 1
      %367 = vperm.xlu0 %366, %v228
      %v368 = vpop.permute.xlu0 %367
      %369 = vset.pattern.permute.xlu0 1
      %370 = vperm.xlu0 %369, %v229
      %v371 = vpop.permute.xlu0 %370
      %372 = vset.pattern.permute.xlu0 1
      %373 = vperm.xlu0 %372, %v230
      %v374 = vpop.permute.xlu0 %373
      %375 = vset.pattern.permute.xlu0 1
      %376 = vperm.xlu0 %375, %v231
      %v377 = vpop.permute.xlu0 %376
      %378 = vset.pattern.permute.xlu0 1
      %379 = vperm.xlu0 %378, %v232
      %v380 = vpop.permute.xlu0 %379
      %381 = vset.pattern.permute.xlu0 1
      %382 = vperm.xlu0 %381, %v233
      %v383 = vpop.permute.xlu0 %382
      %384 = vset.pattern.permute.xlu0 1
      %385 = vperm.xlu0 %384, %v234
      %v386 = vpop.permute.xlu0 %385
      %387 = vset.pattern.permute.xlu0 1
      %388 = vperm.xlu0 %387, %v235
      %v389 = vpop.permute.xlu0 %388
      %390 = vset.pattern.permute.xlu0 1
      %391 = vperm.xlu0 %390, %v236
      %v392 = vpop.permute.xlu0 %391
      %393 = vset.pattern.permute.xlu0 1
      %394 = vperm.xlu0 %393, %v237
      %v395 = vpop.permute.xlu0 %394
      %396 = vset.pattern.permute.xlu0 1
      %397 = vperm.xlu0 %396, %v238
      %v398 = vpop.permute.xlu0 %397
      %399 = vset.pattern.permute.xlu0 1
      %400 = vperm.xlu0 %399, %v239
      %v401 = vpop.permute.xlu0 %400
      %402 = vset.pattern.permute.xlu0 1
      %403 = vperm.xlu0 %402, %v240
      %v404 = vpop.permute.xlu0 %403
      %405 = vset.pattern.permute.xlu0 1
      %406 = vperm.xlu0 %405, %v241
      %v407 = vpop.permute.xlu0 %406
      %408 = vset.pattern.permute.xlu0 1
      %409 = vperm.xlu0 %408, %v242
      %v410 = vpop.permute.xlu0 %409
      %411 = vset.pattern.permute.xlu0 1
      %412 = vperm.xlu0 %411, %v243
      %v413 = vpop.permute.xlu0 %412
      %vm414 = vcmp.eq.s32.totalorder %v368, %v245
      %vm415 = vcmp.eq.s32.totalorder %v371, %v245
      %vm416 = vcmp.eq.s32.totalorder %v374, %v245
      %vm417 = vcmp.eq.s32.totalorder %v377, %v245
      %vm418 = vcmp.eq.s32.totalorder %v380, %v245
      %vm419 = vcmp.eq.s32.totalorder %v383, %v245
      %vm420 = vcmp.eq.s32.totalorder %v386, %v245
      %vm421 = vcmp.eq.s32.totalorder %v389, %v245
      %vm422 = vcmp.eq.s32.totalorder %v392, %v245
      %vm423 = vcmp.eq.s32.totalorder %v395, %v245
      %vm424 = vcmp.eq.s32.totalorder %v398, %v245
      %vm425 = vcmp.eq.s32.totalorder %v401, %v245
      %vm426 = vcmp.eq.s32.totalorder %v404, %v245
      %vm427 = vcmp.eq.s32.totalorder %v407, %v245
      %vm428 = vcmp.eq.s32.totalorder %v410, %v245
      %vm429 = vcmp.eq.s32.totalorder %v413, %v245
      %v430 = vsel %vm414, 1, 0
      %v431 = vsel %vm415, 1, 0
      %v432 = vsel %vm416, 1, 0
      %v433 = vsel %vm417, 1, 0
      %v434 = vsel %vm418, 1, 0
      %v435 = vsel %vm419, 1, 0
      %v436 = vsel %vm420, 1, 0
      %v437 = vsel %vm421, 1, 0
      %v438 = vsel %vm422, 1, 0
      %v439 = vsel %vm423, 1, 0
      %v440 = vsel %vm424, 1, 0
      %v441 = vsel %vm425, 1, 0
      %v442 = vsel %vm426, 1, 0
      %v443 = vsel %vm427, 1, 0
      %v444 = vsel %vm428, 1, 0
      %v445 = vsel %vm429, 1, 0
      %v446 = vcvt.s32.f32 %v430
      %v447 = vcvt.s32.f32 %v431
      %v448 = vcvt.s32.f32 %v432
      %v449 = vcvt.s32.f32 %v433
      %v450 = vcvt.s32.f32 %v434
      %v451 = vcvt.s32.f32 %v435
      %v452 = vcvt.s32.f32 %v436
      %v453 = vcvt.s32.f32 %v437
      %v454 = vcvt.s32.f32 %v438
      %v455 = vcvt.s32.f32 %v439
      %v456 = vcvt.s32.f32 %v440
      %v457 = vcvt.s32.f32 %v441
      %v458 = vcvt.s32.f32 %v442
      %v459 = vcvt.s32.f32 %v443
      %v460 = vcvt.s32.f32 %v444
      %v461 = vcvt.s32.f32 %v445
      %v462 = vpack.c.bf16 %v447, %v446
      %v463 = vpack.c.bf16 %v449, %v448
      %v464 = vpack.c.bf16 %v451, %v450
      %v465 = vpack.c.bf16 %v453, %v452
      %v466 = vpack.c.bf16 %v455, %v454
      %v467 = vpack.c.bf16 %v457, %v456
      %v468 = vpack.c.bf16 %v459, %v458
      %v469 = vpack.c.bf16 %v461, %v460
      %s470 = scalar_lea.vmem %s1, 64
      %v471 = vld [vmem:[%s470] sm:$0xf]
      %v472 = vld [vmem:[%s470 + $0x4] sm:$0xf]
      %v473 = vld [vmem:[%s470 + $0x8] sm:$0xf]
      %v474 = vld [vmem:[%s470 + $0xc] sm:$0xf]
      %v475 = vld [vmem:[%s470 + $0x10] sm:$0xf]
      %v476 = vld [vmem:[%s470 + $0x14] sm:$0xf]
      %v477 = vld [vmem:[%s470 + $0x18] sm:$0xf]
      %v478 = vld [vmem:[%s470 + $0x1c] sm:$0xf]
      %v479 = vld [vmem:[%s470 + $0x20] sm:$0xf]
      %v480 = vld [vmem:[%s470 + $0x24] sm:$0xf]
      %v481 = vld [vmem:[%s470 + $0x28] sm:$0xf]
      %v482 = vld [vmem:[%s470 + $0x2c] sm:$0xf]
      %v483 = vld [vmem:[%s470 + $0x30] sm:$0xf]
      %v484 = vld [vmem:[%s470 + $0x34] sm:$0xf]
      %v485 = vld [vmem:[%s470 + $0x38] sm:$0xf]
      %v486 = vld [vmem:[%s470 + $0x3c] sm:$0xf]
      %v503 = vunpack.c.l.b16 %v471
      %v504 = vunpack.c.l.b16 %v472
      %v505 = vunpack.c.l.b16 %v473
      %v506 = vunpack.c.l.b16 %v474
      %v507 = vunpack.c.l.b16 %v475
      %v508 = vunpack.c.l.b16 %v476
      %v509 = vunpack.c.l.b16 %v477
      %v510 = vunpack.c.l.b16 %v478
      %v511 = vunpack.c.l.b16 %v479
      %v512 = vunpack.c.l.b16 %v480
      %v513 = vunpack.c.l.b16 %v481
      %v514 = vunpack.c.l.b16 %v482
      %v515 = vunpack.c.l.b16 %v483
      %v516 = vunpack.c.l.b16 %v484
      %v517 = vunpack.c.l.b16 %v485
      %v518 = vunpack.c.l.b16 %v486
      %v519 = vpack.c.b16 %v504, %v503
      %v520 = vpack.c.b16 %v506, %v505
      %v521 = vpack.c.b16 %v508, %v507
      %v522 = vpack.c.b16 %v510, %v509
      %v523 = vpack.c.b16 %v512, %v511
      %v524 = vpack.c.b16 %v514, %v513
      %v525 = vpack.c.b16 %v516, %v515
      %v526 = vpack.c.b16 %v518, %v517
      %535 = vmatpush.bf16.msra.mxu0 %v526
      %536 = vmatpush.bf16.msra.mxu0 %v525
      %537 = vmatpush.bf16.msra.mxu0 %v524
      %538 = vmatpush.bf16.msra.mxu0 %v523
      %539 = vmatpush.bf16.msra.mxu0 %v522
      %540 = vmatpush.bf16.msra.mxu0 %v521
      %541 = vmatpush.bf16.msra.mxu0 %v520
      %542 = vmatpush.bf16.msra.mxu0 %v519
      %543 = vmatmul.bf16.gmra.mxu0 %v462
      %v544 = vpop.f32.mrf.mxu0
      %v545 = vadd.f32 0.0, %v544
      %v546 = vpop.f32.mrf.mxu0
      %v547 = vadd.f32 0.0, %v546
      %548 = vmatmul.bf16.gmra.mxu0 %v463
      %v549 = vpop.f32.mrf.mxu0
      %v550 = vadd.f32 0.0, %v549
      %v551 = vpop.f32.mrf.mxu0
      %v552 = vadd.f32 0.0, %v551
      %553 = vmatmul.bf16.gmra.mxu0 %v464
      %v554 = vpop.f32.mrf.mxu0
      %v555 = vadd.f32 0.0, %v554
      %v556 = vpop.f32.mrf.mxu0
      %v557 = vadd.f32 0.0, %v556
      %558 = vmatmul.bf16.gmra.mxu0 %v465
      %v559 = vpop.f32.mrf.mxu0
      %v560 = vadd.f32 0.0, %v559
      %v561 = vpop.f32.mrf.mxu0
      %v562 = vadd.f32 0.0, %v561
      %563 = vmatmul.bf16.gmra.mxu0 %v466
      %v564 = vpop.f32.mrf.mxu0
      %v565 = vadd.f32 0.0, %v564
      %v566 = vpop.f32.mrf.mxu0
      %v567 = vadd.f32 0.0, %v566
      %568 = vmatmul.bf16.gmra.mxu0 %v467
      %v569 = vpop.f32.mrf.mxu0
      %v570 = vadd.f32 0.0, %v569
      %v571 = vpop.f32.mrf.mxu0
      %v572 = vadd.f32 0.0, %v571
      %573 = vmatmul.bf16.gmra.mxu0 %v468
      %v574 = vpop.f32.mrf.mxu0
      %v575 = vadd.f32 0.0, %v574
      %v576 = vpop.f32.mrf.mxu0
      %v577 = vadd.f32 0.0, %v576
      %578 = vmatmul.bf16.gmra.mxu0 %v469
      %v579 = vpop.f32.mrf.mxu0
      %v580 = vadd.f32 0.0, %v579
      %v581 = vpop.f32.mrf.mxu0
      %v582 = vadd.f32 0.0, %v581
      %583 = vdwg.mxu0
      %v600 = vunpack.c.l.b16 %v350
      %v601 = vunpack.c.l.b16 %v351
      %v602 = vunpack.c.l.b16 %v352
      %v603 = vunpack.c.l.b16 %v353
      %v604 = vunpack.c.l.b16 %v354
      %v605 = vunpack.c.l.b16 %v355
      %v606 = vunpack.c.l.b16 %v356
      %v607 = vunpack.c.l.b16 %v357
      %v608 = vunpack.c.l.b16 %v358
      %v609 = vunpack.c.l.b16 %v359
      %v610 = vunpack.c.l.b16 %v360
      %v611 = vunpack.c.l.b16 %v361
      %v612 = vunpack.c.l.b16 %v362
      %v613 = vunpack.c.l.b16 %v363
      %v614 = vunpack.c.l.b16 %v364
      %v615 = vunpack.c.l.b16 %v365
      %v616 = vpack.c.b16 %v601, %v600
      %v617 = vpack.c.b16 %v603, %v602
      %v618 = vpack.c.b16 %v605, %v604
      %v619 = vpack.c.b16 %v607, %v606
      %v620 = vpack.c.b16 %v609, %v608
      %v621 = vpack.c.b16 %v611, %v610
      %v622 = vpack.c.b16 %v613, %v612
      %v623 = vpack.c.b16 %v615, %v614
      %632 = vmatpush.bf16.msra.mxu0 %v623
      %633 = vmatpush.bf16.msra.mxu0 %v622
      %634 = vmatpush.bf16.msra.mxu0 %v621
      %635 = vmatpush.bf16.msra.mxu0 %v620
      %636 = vmatpush.bf16.msra.mxu0 %v619
      %637 = vmatpush.bf16.msra.mxu0 %v618
      %638 = vmatpush.bf16.msra.mxu0 %v617
      %639 = vmatpush.bf16.msra.mxu0 %v616
      %640 = vmatmul.bf16.gmra.mxu0 %v342
      %v641 = vpop.f32.mrf.mxu0
      %v642 = vadd.f32 %v545, %v641
      %v643 = vpop.f32.mrf.mxu0
      %v644 = vadd.f32 %v547, %v643
      %645 = vmatmul.bf16.gmra.mxu0 %v343
      %v646 = vpop.f32.mrf.mxu0
      %v647 = vadd.f32 %v550, %v646
      %v648 = vpop.f32.mrf.mxu0
      %v649 = vadd.f32 %v552, %v648
      %650 = vmatmul.bf16.gmra.mxu0 %v344
      %v651 = vpop.f32.mrf.mxu0
      %v652 = vadd.f32 %v555, %v651
      %v653 = vpop.f32.mrf.mxu0
      %v654 = vadd.f32 %v557, %v653
      %655 = vmatmul.bf16.gmra.mxu0 %v345
      %v656 = vpop.f32.mrf.mxu0
      %v657 = vadd.f32 %v560, %v656
      %v658 = vpop.f32.mrf.mxu0
      %v659 = vadd.f32 %v562, %v658
      %660 = vmatmul.bf16.gmra.mxu0 %v346
      %v661 = vpop.f32.mrf.mxu0
      %v662 = vadd.f32 %v565, %v661
      %v663 = vpop.f32.mrf.mxu0
      %v664 = vadd.f32 %v567, %v663
      %665 = vmatmul.bf16.gmra.mxu0 %v347
      %v666 = vpop.f32.mrf.mxu0
      %v667 = vadd.f32 %v570, %v666
      %v668 = vpop.f32.mrf.mxu0
      %v669 = vadd.f32 %v572, %v668
      %670 = vmatmul.bf16.gmra.mxu0 %v348
      %v671 = vpop.f32.mrf.mxu0
      %v672 = vadd.f32 %v575, %v671
      %v673 = vpop.f32.mrf.mxu0
      %v674 = vadd.f32 %v577, %v673
      %675 = vmatmul.bf16.gmra.mxu0 %v349
      %v676 = vpop.f32.mrf.mxu0
      %v677 = vadd.f32 %v580, %v676
      %v678 = vpop.f32.mrf.mxu0
      %v679 = vadd.f32 %v582, %v678
      %680 = vdwg.mxu0
      %681 = vset.pattern.permute.xlu0 2
      %682 = vperm.xlu0 %681, %v228
      %v683 = vpop.permute.xlu0 %682
      %684 = vset.pattern.permute.xlu0 2
      %685 = vperm.xlu0 %684, %v229
      %v686 = vpop.permute.xlu0 %685
      %687 = vset.pattern.permute.xlu0 2
      %688 = vperm.xlu0 %687, %v230
      %v689 = vpop.permute.xlu0 %688
      %690 = vset.pattern.permute.xlu0 2
      %691 = vperm.xlu0 %690, %v231
      %v692 = vpop.permute.xlu0 %691
      %693 = vset.pattern.permute.xlu0 2
      %694 = vperm.xlu0 %693, %v232
      %v695 = vpop.permute.xlu0 %694
      %696 = vset.pattern.permute.xlu0 2
      %697 = vperm.xlu0 %696, %v233
      %v698 = vpop.permute.xlu0 %697
      %699 = vset.pattern.permute.xlu0 2
      %700 = vperm.xlu0 %699, %v234
      %v701 = vpop.permute.xlu0 %700
      %702 = vset.pattern.permute.xlu0 2
      %703 = vperm.xlu0 %702, %v235
      %v704 = vpop.permute.xlu0 %703
      %705 = vset.pattern.permute.xlu0 2
      %706 = vperm.xlu0 %705, %v236
      %v707 = vpop.permute.xlu0 %706
      %708 = vset.pattern.permute.xlu0 2
      %709 = vperm.xlu0 %708, %v237
      %v710 = vpop.permute.xlu0 %709
      %711 = vset.pattern.permute.xlu0 2
      %712 = vperm.xlu0 %711, %v238
      %v713 = vpop.permute.xlu0 %712
      %714 = vset.pattern.permute.xlu0 2
      %715 = vperm.xlu0 %714, %v239
      %v716 = vpop.permute.xlu0 %715
      %717 = vset.pattern.permute.xlu0 2
      %718 = vperm.xlu0 %717, %v240
      %v719 = vpop.permute.xlu0 %718
      %720 = vset.pattern.permute.xlu0 2
      %721 = vperm.xlu0 %720, %v241
      %v722 = vpop.permute.xlu0 %721
      %723 = vset.pattern.permute.xlu0 2
      %724 = vperm.xlu0 %723, %v242
      %v725 = vpop.permute.xlu0 %724
      %726 = vset.pattern.permute.xlu0 2
      %727 = vperm.xlu0 %726, %v243
      %v728 = vpop.permute.xlu0 %727
      %vm729 = vcmp.eq.s32.totalorder %v683, %v245
      %vm730 = vcmp.eq.s32.totalorder %v686, %v245
      %vm731 = vcmp.eq.s32.totalorder %v689, %v245
      %vm732 = vcmp.eq.s32.totalorder %v692, %v245
      %vm733 = vcmp.eq.s32.totalorder %v695, %v245
      %vm734 = vcmp.eq.s32.totalorder %v698, %v245
      %vm735 = vcmp.eq.s32.totalorder %v701, %v245
      %vm736 = vcmp.eq.s32.totalorder %v704, %v245
      %vm737 = vcmp.eq.s32.totalorder %v707, %v245
      %vm738 = vcmp.eq.s32.totalorder %v710, %v245
      %vm739 = vcmp.eq.s32.totalorder %v713, %v245
      %vm740 = vcmp.eq.s32.totalorder %v716, %v245
      %vm741 = vcmp.eq.s32.totalorder %v719, %v245
      %vm742 = vcmp.eq.s32.totalorder %v722, %v245
      %vm743 = vcmp.eq.s32.totalorder %v725, %v245
      %vm744 = vcmp.eq.s32.totalorder %v728, %v245
      %v745 = vsel %vm729, 1, 0
      %v746 = vsel %vm730, 1, 0
      %v747 = vsel %vm731, 1, 0
      %v748 = vsel %vm732, 1, 0
      %v749 = vsel %vm733, 1, 0
      %v750 = vsel %vm734, 1, 0
      %v751 = vsel %vm735, 1, 0
      %v752 = vsel %vm736, 1, 0
      %v753 = vsel %vm737, 1, 0
      %v754 = vsel %vm738, 1, 0
      %v755 = vsel %vm739, 1, 0
      %v756 = vsel %vm740, 1, 0
      %v757 = vsel %vm741, 1, 0
      %v758 = vsel %vm742, 1, 0
      %v759 = vsel %vm743, 1, 0
      %v760 = vsel %vm744, 1, 0
      %v761 = vcvt.s32.f32 %v745
      %v762 = vcvt.s32.f32 %v746
      %v763 = vcvt.s32.f32 %v747
      %v764 = vcvt.s32.f32 %v748
      %v765 = vcvt.s32.f32 %v749
      %v766 = vcvt.s32.f32 %v750
      %v767 = vcvt.s32.f32 %v751
      %v768 = vcvt.s32.f32 %v752
      %v769 = vcvt.s32.f32 %v753
      %v770 = vcvt.s32.f32 %v754
      %v771 = vcvt.s32.f32 %v755
      %v772 = vcvt.s32.f32 %v756
      %v773 = vcvt.s32.f32 %v757
      %v774 = vcvt.s32.f32 %v758
      %v775 = vcvt.s32.f32 %v759
      %v776 = vcvt.s32.f32 %v760
      %v777 = vpack.c.bf16 %v762, %v761
      %v778 = vpack.c.bf16 %v764, %v763
      %v779 = vpack.c.bf16 %v766, %v765
      %v780 = vpack.c.bf16 %v768, %v767
      %v781 = vpack.c.bf16 %v770, %v769
      %v782 = vpack.c.bf16 %v772, %v771
      %v783 = vpack.c.bf16 %v774, %v773
      %v784 = vpack.c.bf16 %v776, %v775
      %s785 = scalar_lea.vmem %s1, 128
      %v786 = vld [vmem:[%s785] sm:$0xf]
      %v787 = vld [vmem:[%s785 + $0x4] sm:$0xf]
      %v788 = vld [vmem:[%s785 + $0x8] sm:$0xf]
      %v789 = vld [vmem:[%s785 + $0xc] sm:$0xf]
      %v790 = vld [vmem:[%s785 + $0x10] sm:$0xf]
      %v791 = vld [vmem:[%s785 + $0x14] sm:$0xf]
      %v792 = vld [vmem:[%s785 + $0x18] sm:$0xf]
      %v793 = vld [vmem:[%s785 + $0x1c] sm:$0xf]
      %v794 = vld [vmem:[%s785 + $0x20] sm:$0xf]
      %v795 = vld [vmem:[%s785 + $0x24] sm:$0xf]
      %v796 = vld [vmem:[%s785 + $0x28] sm:$0xf]
      %v797 = vld [vmem:[%s785 + $0x2c] sm:$0xf]
      %v798 = vld [vmem:[%s785 + $0x30] sm:$0xf]
      %v799 = vld [vmem:[%s785 + $0x34] sm:$0xf]
      %v800 = vld [vmem:[%s785 + $0x38] sm:$0xf]
      %v801 = vld [vmem:[%s785 + $0x3c] sm:$0xf]
      %v818 = vunpack.c.l.b16 %v786
      %v819 = vunpack.c.l.b16 %v787
      %v820 = vunpack.c.l.b16 %v788
      %v821 = vunpack.c.l.b16 %v789
      %v822 = vunpack.c.l.b16 %v790
      %v823 = vunpack.c.l.b16 %v791
      %v824 = vunpack.c.l.b16 %v792
      %v825 = vunpack.c.l.b16 %v793
      %v826 = vunpack.c.l.b16 %v794
      %v827 = vunpack.c.l.b16 %v795
      %v828 = vunpack.c.l.b16 %v796
      %v829 = vunpack.c.l.b16 %v797
      %v830 = vunpack.c.l.b16 %v798
      %v831 = vunpack.c.l.b16 %v799
      %v832 = vunpack.c.l.b16 %v800
      %v833 = vunpack.c.l.b16 %v801
      %v834 = vpack.c.b16 %v819, %v818
      %v835 = vpack.c.b16 %v821, %v820
      %v836 = vpack.c.b16 %v823, %v822
      %v837 = vpack.c.b16 %v825, %v824
      %v838 = vpack.c.b16 %v827, %v826
      %v839 = vpack.c.b16 %v829, %v828
      %v840 = vpack.c.b16 %v831, %v830
      %v841 = vpack.c.b16 %v833, %v832
      %850 = vmatpush.bf16.msra.mxu0 %v841
      %851 = vmatpush.bf16.msra.mxu0 %v840
      %852 = vmatpush.bf16.msra.mxu0 %v839
      %853 = vmatpush.bf16.msra.mxu0 %v838
      %854 = vmatpush.bf16.msra.mxu0 %v837
      %855 = vmatpush.bf16.msra.mxu0 %v836
      %856 = vmatpush.bf16.msra.mxu0 %v835
      %857 = vmatpush.bf16.msra.mxu0 %v834
      %858 = vmatmul.bf16.gmra.mxu0 %v777
      %v859 = vpop.f32.mrf.mxu0
      %v860 = vadd.f32 0.0, %v859
      %v861 = vpop.f32.mrf.mxu0
      %v862 = vadd.f32 0.0, %v861
      %863 = vmatmul.bf16.gmra.mxu0 %v778
      %v864 = vpop.f32.mrf.mxu0
      %v865 = vadd.f32 0.0, %v864
      %v866 = vpop.f32.mrf.mxu0
      %v867 = vadd.f32 0.0, %v866
      %868 = vmatmul.bf16.gmra.mxu0 %v779
      %v869 = vpop.f32.mrf.mxu0
      %v870 = vadd.f32 0.0, %v869
      %v871 = vpop.f32.mrf.mxu0
      %v872 = vadd.f32 0.0, %v871
      %873 = vmatmul.bf16.gmra.mxu0 %v780
      %v874 = vpop.f32.mrf.mxu0
      %v875 = vadd.f32 0.0, %v874
      %v876 = vpop.f32.mrf.mxu0
      %v877 = vadd.f32 0.0, %v876
      %878 = vmatmul.bf16.gmra.mxu0 %v781
      %v879 = vpop.f32.mrf.mxu0
      %v880 = vadd.f32 0.0, %v879
      %v881 = vpop.f32.mrf.mxu0
      %v882 = vadd.f32 0.0, %v881
      %883 = vmatmul.bf16.gmra.mxu0 %v782
      %v884 = vpop.f32.mrf.mxu0
      %v885 = vadd.f32 0.0, %v884
      %v886 = vpop.f32.mrf.mxu0
      %v887 = vadd.f32 0.0, %v886
      %888 = vmatmul.bf16.gmra.mxu0 %v783
      %v889 = vpop.f32.mrf.mxu0
      %v890 = vadd.f32 0.0, %v889
      %v891 = vpop.f32.mrf.mxu0
      %v892 = vadd.f32 0.0, %v891
      %893 = vmatmul.bf16.gmra.mxu0 %v784
      %v894 = vpop.f32.mrf.mxu0
      %v895 = vadd.f32 0.0, %v894
      %v896 = vpop.f32.mrf.mxu0
      %v897 = vadd.f32 0.0, %v896
      %898 = vdwg.mxu0
      %v899 = vadd.f32 %v642, %v860
      %v900 = vadd.f32 %v644, %v862
      %v901 = vadd.f32 %v647, %v865
      %v902 = vadd.f32 %v649, %v867
      %v903 = vadd.f32 %v652, %v870
      %v904 = vadd.f32 %v654, %v872
      %v905 = vadd.f32 %v657, %v875
      %v906 = vadd.f32 %v659, %v877
      %v907 = vadd.f32 %v662, %v880
      %v908 = vadd.f32 %v664, %v882
      %v909 = vadd.f32 %v667, %v885
      %v910 = vadd.f32 %v669, %v887
      %v911 = vadd.f32 %v672, %v890
      %v912 = vadd.f32 %v674, %v892
      %v913 = vadd.f32 %v677, %v895
      %v914 = vadd.f32 %v679, %v897
      %915 = vset.pattern.permute.xlu0 3
      %916 = vperm.xlu0 %915, %v228
      %v917 = vpop.permute.xlu0 %916
      %918 = vset.pattern.permute.xlu0 3
      %919 = vperm.xlu0 %918, %v229
      %v920 = vpop.permute.xlu0 %919
      %921 = vset.pattern.permute.xlu0 3
      %922 = vperm.xlu0 %921, %v230
      %v923 = vpop.permute.xlu0 %922
      %924 = vset.pattern.permute.xlu0 3
      %925 = vperm.xlu0 %924, %v231
      %v926 = vpop.permute.xlu0 %925
      %927 = vset.pattern.permute.xlu0 3
      %928 = vperm.xlu0 %927, %v232
      %v929 = vpop.permute.xlu0 %928
      %930 = vset.pattern.permute.xlu0 3
      %931 = vperm.xlu0 %930, %v233
      %v932 = vpop.permute.xlu0 %931
      %933 = vset.pattern.permute.xlu0 3
      %934 = vperm.xlu0 %933, %v234
      %v935 = vpop.permute.xlu0 %934
      %936 = vset.pattern.permute.xlu0 3
      %937 = vperm.xlu0 %936, %v235
      %v938 = vpop.permute.xlu0 %937
      %939 = vset.pattern.permute.xlu0 3
      %940 = vperm.xlu0 %939, %v236
      %v941 = vpop.permute.xlu0 %940
      %942 = vset.pattern.permute.xlu0 3
      %943 = vperm.xlu0 %942, %v237
      %v944 = vpop.permute.xlu0 %943
      %945 = vset.pattern.permute.xlu0 3
      %946 = vperm.xlu0 %945, %v238
      %v947 = vpop.permute.xlu0 %946
      %948 = vset.pattern.permute.xlu0 3
      %949 = vperm.xlu0 %948, %v239
      %v950 = vpop.permute.xlu0 %949
      %951 = vset.pattern.permute.xlu0 3
      %952 = vperm.xlu0 %951, %v240
      %v953 = vpop.permute.xlu0 %952
      %954 = vset.pattern.permute.xlu0 3
      %955 = vperm.xlu0 %954, %v241
      %v956 = vpop.permute.xlu0 %955
      %957 = vset.pattern.permute.xlu0 3
      %958 = vperm.xlu0 %957, %v242
      %v959 = vpop.permute.xlu0 %958
      %960 = vset.pattern.permute.xlu0 3
      %961 = vperm.xlu0 %960, %v243
      %v962 = vpop.permute.xlu0 %961
      %vm963 = vcmp.eq.s32.totalorder %v917, %v245
      %vm964 = vcmp.eq.s32.totalorder %v920, %v245
      %vm965 = vcmp.eq.s32.totalorder %v923, %v245
      %vm966 = vcmp.eq.s32.totalorder %v926, %v245
      %vm967 = vcmp.eq.s32.totalorder %v929, %v245
      %vm968 = vcmp.eq.s32.totalorder %v932, %v245
      %vm969 = vcmp.eq.s32.totalorder %v935, %v245
      %vm970 = vcmp.eq.s32.totalorder %v938, %v245
      %vm971 = vcmp.eq.s32.totalorder %v941, %v245
      %vm972 = vcmp.eq.s32.totalorder %v944, %v245
      %vm973 = vcmp.eq.s32.totalorder %v947, %v245
      %vm974 = vcmp.eq.s32.totalorder %v950, %v245
      %vm975 = vcmp.eq.s32.totalorder %v953, %v245
      %vm976 = vcmp.eq.s32.totalorder %v956, %v245
      %vm977 = vcmp.eq.s32.totalorder %v959, %v245
      %vm978 = vcmp.eq.s32.totalorder %v962, %v245
      %v979 = vsel %vm963, 1, 0
      %v980 = vsel %vm964, 1, 0
      %v981 = vsel %vm965, 1, 0
      %v982 = vsel %vm966, 1, 0
      %v983 = vsel %vm967, 1, 0
      %v984 = vsel %vm968, 1, 0
      %v985 = vsel %vm969, 1, 0
      %v986 = vsel %vm970, 1, 0
      %v987 = vsel %vm971, 1, 0
      %v988 = vsel %vm972, 1, 0
      %v989 = vsel %vm973, 1, 0
      %v990 = vsel %vm974, 1, 0
      %v991 = vsel %vm975, 1, 0
      %v992 = vsel %vm976, 1, 0
      %v993 = vsel %vm977, 1, 0
      %v994 = vsel %vm978, 1, 0
      %v995 = vcvt.s32.f32 %v979
      %v996 = vcvt.s32.f32 %v980
      %v997 = vcvt.s32.f32 %v981
      %v998 = vcvt.s32.f32 %v982
      %v999 = vcvt.s32.f32 %v983
      %v1000 = vcvt.s32.f32 %v984
      %v1001 = vcvt.s32.f32 %v985
      %v1002 = vcvt.s32.f32 %v986
      %v1003 = vcvt.s32.f32 %v987
      %v1004 = vcvt.s32.f32 %v988
      %v1005 = vcvt.s32.f32 %v989
      %v1006 = vcvt.s32.f32 %v990
      %v1007 = vcvt.s32.f32 %v991
      %v1008 = vcvt.s32.f32 %v992
      %v1009 = vcvt.s32.f32 %v993
      %v1010 = vcvt.s32.f32 %v994
      %v1011 = vpack.c.bf16 %v996, %v995
      %v1012 = vpack.c.bf16 %v998, %v997
      %v1013 = vpack.c.bf16 %v1000, %v999
      %v1014 = vpack.c.bf16 %v1002, %v1001
      %v1015 = vpack.c.bf16 %v1004, %v1003
      %v1016 = vpack.c.bf16 %v1006, %v1005
      %v1017 = vpack.c.bf16 %v1008, %v1007
      %v1018 = vpack.c.bf16 %v1010, %v1009
      %s1019 = scalar_lea.vmem %s1, 192
      %v1020 = vld [vmem:[%s1019] sm:$0xf]
      %v1021 = vld [vmem:[%s1019 + $0x4] sm:$0xf]
      %v1022 = vld [vmem:[%s1019 + $0x8] sm:$0xf]
      %v1023 = vld [vmem:[%s1019 + $0xc] sm:$0xf]
      %v1024 = vld [vmem:[%s1019 + $0x10] sm:$0xf]
      %v1025 = vld [vmem:[%s1019 + $0x14] sm:$0xf]
      %v1026 = vld [vmem:[%s1019 + $0x18] sm:$0xf]
      %v1027 = vld [vmem:[%s1019 + $0x1c] sm:$0xf]
      %v1028 = vld [vmem:[%s1019 + $0x20] sm:$0xf]
      %v1029 = vld [vmem:[%s1019 + $0x24] sm:$0xf]
      %v1030 = vld [vmem:[%s1019 + $0x28] sm:$0xf]
      %v1031 = vld [vmem:[%s1019 + $0x2c] sm:$0xf]
      %v1032 = vld [vmem:[%s1019 + $0x30] sm:$0xf]
      %v1033 = vld [vmem:[%s1019 + $0x34] sm:$0xf]
      %v1034 = vld [vmem:[%s1019 + $0x38] sm:$0xf]
      %v1035 = vld [vmem:[%s1019 + $0x3c] sm:$0xf]
      %v1052 = vunpack.c.l.b16 %v1020
      %v1053 = vunpack.c.l.b16 %v1021
      %v1054 = vunpack.c.l.b16 %v1022
      %v1055 = vunpack.c.l.b16 %v1023
      %v1056 = vunpack.c.l.b16 %v1024
      %v1057 = vunpack.c.l.b16 %v1025
      %v1058 = vunpack.c.l.b16 %v1026
      %v1059 = vunpack.c.l.b16 %v1027
      %v1060 = vunpack.c.l.b16 %v1028
      %v1061 = vunpack.c.l.b16 %v1029
      %v1062 = vunpack.c.l.b16 %v1030
      %v1063 = vunpack.c.l.b16 %v1031
      %v1064 = vunpack.c.l.b16 %v1032
      %v1065 = vunpack.c.l.b16 %v1033
      %v1066 = vunpack.c.l.b16 %v1034
      %v1067 = vunpack.c.l.b16 %v1035
      %v1068 = vpack.c.b16 %v1053, %v1052
      %v1069 = vpack.c.b16 %v1055, %v1054
      %v1070 = vpack.c.b16 %v1057, %v1056
      %v1071 = vpack.c.b16 %v1059, %v1058
      %v1072 = vpack.c.b16 %v1061, %v1060
      %v1073 = vpack.c.b16 %v1063, %v1062
      %v1074 = vpack.c.b16 %v1065, %v1064
      %v1075 = vpack.c.b16 %v1067, %v1066
      %1084 = vmatpush.bf16.msra.mxu0 %v1075
      %1085 = vmatpush.bf16.msra.mxu0 %v1074
      %1086 = vmatpush.bf16.msra.mxu0 %v1073
      %1087 = vmatpush.bf16.msra.mxu0 %v1072
      %1088 = vmatpush.bf16.msra.mxu0 %v1071
      %1089 = vmatpush.bf16.msra.mxu0 %v1070
      %1090 = vmatpush.bf16.msra.mxu0 %v1069
      %1091 = vmatpush.bf16.msra.mxu0 %v1068
      %1092 = vmatmul.bf16.gmra.mxu0 %v1011
      %v1093 = vpop.f32.mrf.mxu0
      %v1094 = vadd.f32 0.0, %v1093
      %v1095 = vpop.f32.mrf.mxu0
      %v1096 = vadd.f32 0.0, %v1095
      %1097 = vmatmul.bf16.gmra.mxu0 %v1012
      %v1098 = vpop.f32.mrf.mxu0
      %v1099 = vadd.f32 0.0, %v1098
      %v1100 = vpop.f32.mrf.mxu0
      %v1101 = vadd.f32 0.0, %v1100
      %1102 = vmatmul.bf16.gmra.mxu0 %v1013
      %v1103 = vpop.f32.mrf.mxu0
      %v1104 = vadd.f32 0.0, %v1103
      %v1105 = vpop.f32.mrf.mxu0
      %v1106 = vadd.f32 0.0, %v1105
      %1107 = vmatmul.bf16.gmra.mxu0 %v1014
      %v1108 = vpop.f32.mrf.mxu0
      %v1109 = vadd.f32 0.0, %v1108
      %v1110 = vpop.f32.mrf.mxu0
      %v1111 = vadd.f32 0.0, %v1110
      %1112 = vmatmul.bf16.gmra.mxu0 %v1015
      %v1113 = vpop.f32.mrf.mxu0
      %v1114 = vadd.f32 0.0, %v1113
      %v1115 = vpop.f32.mrf.mxu0
      %v1116 = vadd.f32 0.0, %v1115
      %1117 = vmatmul.bf16.gmra.mxu0 %v1016
      %v1118 = vpop.f32.mrf.mxu0
      %v1119 = vadd.f32 0.0, %v1118
      %v1120 = vpop.f32.mrf.mxu0
      %v1121 = vadd.f32 0.0, %v1120
      %1122 = vmatmul.bf16.gmra.mxu0 %v1017
      %v1123 = vpop.f32.mrf.mxu0
      %v1124 = vadd.f32 0.0, %v1123
      %v1125 = vpop.f32.mrf.mxu0
      %v1126 = vadd.f32 0.0, %v1125
      %1127 = vmatmul.bf16.gmra.mxu0 %v1018
      %v1128 = vpop.f32.mrf.mxu0
      %v1129 = vadd.f32 0.0, %v1128
      %v1130 = vpop.f32.mrf.mxu0
      %v1131 = vadd.f32 0.0, %v1130
      %1132 = vdwg.mxu0
      %v1133 = vadd.f32 %v899, %v1094
      %v1134 = vadd.f32 %v900, %v1096
      %v1135 = vadd.f32 %v901, %v1099
      %v1136 = vadd.f32 %v902, %v1101
      %v1137 = vadd.f32 %v903, %v1104
      %v1138 = vadd.f32 %v904, %v1106
      %v1139 = vadd.f32 %v905, %v1109
      %v1140 = vadd.f32 %v906, %v1111
      %v1141 = vadd.f32 %v907, %v1114
      %v1142 = vadd.f32 %v908, %v1116
      %v1143 = vadd.f32 %v909, %v1119
      %v1144 = vadd.f32 %v910, %v1121
      %v1145 = vadd.f32 %v911, %v1124
      %v1146 = vadd.f32 %v912, %v1126
      %v1147 = vadd.f32 %v913, %v1129
      %v1148 = vadd.f32 %v914, %v1131
      %1149 = vset.pattern.permute.xlu0 4
      %1150 = vperm.xlu0 %1149, %v228
      %v1151 = vpop.permute.xlu0 %1150
      %1152 = vset.pattern.permute.xlu0 4
      %1153 = vperm.xlu0 %1152, %v229
      %v1154 = vpop.permute.xlu0 %1153
      %1155 = vset.pattern.permute.xlu0 4
      %1156 = vperm.xlu0 %1155, %v230
      %v1157 = vpop.permute.xlu0 %1156
      %1158 = vset.pattern.permute.xlu0 4
      %1159 = vperm.xlu0 %1158, %v231
      %v1160 = vpop.permute.xlu0 %1159
      %1161 = vset.pattern.permute.xlu0 4
      %1162 = vperm.xlu0 %1161, %v232
      %v1163 = vpop.permute.xlu0 %1162
      %1164 = vset.pattern.permute.xlu0 4
      %1165 = vperm.xlu0 %1164, %v233
      %v1166 = vpop.permute.xlu0 %1165
      %1167 = vset.pattern.permute.xlu0 4
      %1168 = vperm.xlu0 %1167, %v234
      %v1169 = vpop.permute.xlu0 %1168
      %1170 = vset.pattern.permute.xlu0 4
      %1171 = vperm.xlu0 %1170, %v235
      %v1172 = vpop.permute.xlu0 %1171
      %1173 = vset.pattern.permute.xlu0 4
      %1174 = vperm.xlu0 %1173, %v236
      %v1175 = vpop.permute.xlu0 %1174
      %1176 = vset.pattern.permute.xlu0 4
      %1177 = vperm.xlu0 %1176, %v237
      %v1178 = vpop.permute.xlu0 %1177
      %1179 = vset.pattern.permute.xlu0 4
      %1180 = vperm.xlu0 %1179, %v238
      %v1181 = vpop.permute.xlu0 %1180
      %1182 = vset.pattern.permute.xlu0 4
      %1183 = vperm.xlu0 %1182, %v239
      %v1184 = vpop.permute.xlu0 %1183
      %1185 = vset.pattern.permute.xlu0 4
      %1186 = vperm.xlu0 %1185, %v240
      %v1187 = vpop.permute.xlu0 %1186
      %1188 = vset.pattern.permute.xlu0 4
      %1189 = vperm.xlu0 %1188, %v241
      %v1190 = vpop.permute.xlu0 %1189
      %1191 = vset.pattern.permute.xlu0 4
      %1192 = vperm.xlu0 %1191, %v242
      %v1193 = vpop.permute.xlu0 %1192
      %1194 = vset.pattern.permute.xlu0 4
      %1195 = vperm.xlu0 %1194, %v243
      %v1196 = vpop.permute.xlu0 %1195
      %vm1197 = vcmp.eq.s32.totalorder %v1151, %v245
      %vm1198 = vcmp.eq.s32.totalorder %v1154, %v245
      %vm1199 = vcmp.eq.s32.totalorder %v1157, %v245
      %vm1200 = vcmp.eq.s32.totalorder %v1160, %v245
      %vm1201 = vcmp.eq.s32.totalorder %v1163, %v245
      %vm1202 = vcmp.eq.s32.totalorder %v1166, %v245
      %vm1203 = vcmp.eq.s32.totalorder %v1169, %v245
      %vm1204 = vcmp.eq.s32.totalorder %v1172, %v245
      %vm1205 = vcmp.eq.s32.totalorder %v1175, %v245
      %vm1206 = vcmp.eq.s32.totalorder %v1178, %v245
      %vm1207 = vcmp.eq.s32.totalorder %v1181, %v245
      %vm1208 = vcmp.eq.s32.totalorder %v1184, %v245
      %vm1209 = vcmp.eq.s32.totalorder %v1187, %v245
      %vm1210 = vcmp.eq.s32.totalorder %v1190, %v245
      %vm1211 = vcmp.eq.s32.totalorder %v1193, %v245
      %vm1212 = vcmp.eq.s32.totalorder %v1196, %v245
      %v1213 = vsel %vm1197, 1, 0
      %v1214 = vsel %vm1198, 1, 0
      %v1215 = vsel %vm1199, 1, 0
      %v1216 = vsel %vm1200, 1, 0
      %v1217 = vsel %vm1201, 1, 0
      %v1218 = vsel %vm1202, 1, 0
      %v1219 = vsel %vm1203, 1, 0
      %v1220 = vsel %vm1204, 1, 0
      %v1221 = vsel %vm1205, 1, 0
      %v1222 = vsel %vm1206, 1, 0
      %v1223 = vsel %vm1207, 1, 0
      %v1224 = vsel %vm1208, 1, 0
      %v1225 = vsel %vm1209, 1, 0
      %v1226 = vsel %vm1210, 1, 0
      %v1227 = vsel %vm1211, 1, 0
      %v1228 = vsel %vm1212, 1, 0
      %v1229 = vcvt.s32.f32 %v1213
      %v1230 = vcvt.s32.f32 %v1214
      %v1231 = vcvt.s32.f32 %v1215
      %v1232 = vcvt.s32.f32 %v1216
      %v1233 = vcvt.s32.f32 %v1217
      %v1234 = vcvt.s32.f32 %v1218
      %v1235 = vcvt.s32.f32 %v1219
      %v1236 = vcvt.s32.f32 %v1220
      %v1237 = vcvt.s32.f32 %v1221
      %v1238 = vcvt.s32.f32 %v1222
      %v1239 = vcvt.s32.f32 %v1223
      %v1240 = vcvt.s32.f32 %v1224
      %v1241 = vcvt.s32.f32 %v1225
      %v1242 = vcvt.s32.f32 %v1226
      %v1243 = vcvt.s32.f32 %v1227
      %v1244 = vcvt.s32.f32 %v1228
      %v1245 = vpack.c.bf16 %v1230, %v1229
      %v1246 = vpack.c.bf16 %v1232, %v1231
      %v1247 = vpack.c.bf16 %v1234, %v1233
      %v1248 = vpack.c.bf16 %v1236, %v1235
      %v1249 = vpack.c.bf16 %v1238, %v1237
      %v1250 = vpack.c.bf16 %v1240, %v1239
      %v1251 = vpack.c.bf16 %v1242, %v1241
      %v1252 = vpack.c.bf16 %v1244, %v1243
      %s1253 = scalar_lea.vmem %s1, 256
      %v1254 = vld [vmem:[%s1253] sm:$0xf]
      %v1255 = vld [vmem:[%s1253 + $0x4] sm:$0xf]
      %v1256 = vld [vmem:[%s1253 + $0x8] sm:$0xf]
      %v1257 = vld [vmem:[%s1253 + $0xc] sm:$0xf]
      %v1258 = vld [vmem:[%s1253 + $0x10] sm:$0xf]
      %v1259 = vld [vmem:[%s1253 + $0x14] sm:$0xf]
      %v1260 = vld [vmem:[%s1253 + $0x18] sm:$0xf]
      %v1261 = vld [vmem:[%s1253 + $0x1c] sm:$0xf]
      %v1262 = vld [vmem:[%s1253 + $0x20] sm:$0xf]
      %v1263 = vld [vmem:[%s1253 + $0x24] sm:$0xf]
      %v1264 = vld [vmem:[%s1253 + $0x28] sm:$0xf]
      %v1265 = vld [vmem:[%s1253 + $0x2c] sm:$0xf]
      %v1266 = vld [vmem:[%s1253 + $0x30] sm:$0xf]
      %v1267 = vld [vmem:[%s1253 + $0x34] sm:$0xf]
      %v1268 = vld [vmem:[%s1253 + $0x38] sm:$0xf]
      %v1269 = vld [vmem:[%s1253 + $0x3c] sm:$0xf]
      %v1286 = vunpack.c.l.b16 %v1254
      %v1287 = vunpack.c.l.b16 %v1255
      %v1288 = vunpack.c.l.b16 %v1256
      %v1289 = vunpack.c.l.b16 %v1257
      %v1290 = vunpack.c.l.b16 %v1258
      %v1291 = vunpack.c.l.b16 %v1259
      %v1292 = vunpack.c.l.b16 %v1260
      %v1293 = vunpack.c.l.b16 %v1261
      %v1294 = vunpack.c.l.b16 %v1262
      %v1295 = vunpack.c.l.b16 %v1263
      %v1296 = vunpack.c.l.b16 %v1264
      %v1297 = vunpack.c.l.b16 %v1265
      %v1298 = vunpack.c.l.b16 %v1266
      %v1299 = vunpack.c.l.b16 %v1267
      %v1300 = vunpack.c.l.b16 %v1268
      %v1301 = vunpack.c.l.b16 %v1269
      %v1302 = vpack.c.b16 %v1287, %v1286
      %v1303 = vpack.c.b16 %v1289, %v1288
      %v1304 = vpack.c.b16 %v1291, %v1290
      %v1305 = vpack.c.b16 %v1293, %v1292
      %v1306 = vpack.c.b16 %v1295, %v1294
      %v1307 = vpack.c.b16 %v1297, %v1296
      %v1308 = vpack.c.b16 %v1299, %v1298
      %v1309 = vpack.c.b16 %v1301, %v1300
      %1318 = vmatpush.bf16.msra.mxu0 %v1309
      %1319 = vmatpush.bf16.msra.mxu0 %v1308
      %1320 = vmatpush.bf16.msra.mxu0 %v1307
      %1321 = vmatpush.bf16.msra.mxu0 %v1306
      %1322 = vmatpush.bf16.msra.mxu0 %v1305
      %1323 = vmatpush.bf16.msra.mxu0 %v1304
      %1324 = vmatpush.bf16.msra.mxu0 %v1303
      %1325 = vmatpush.bf16.msra.mxu0 %v1302
      %1326 = vmatmul.bf16.gmra.mxu0 %v1245
      %v1327 = vpop.f32.mrf.mxu0
      %v1328 = vadd.f32 0.0, %v1327
      %v1329 = vpop.f32.mrf.mxu0
      %v1330 = vadd.f32 0.0, %v1329
      %1331 = vmatmul.bf16.gmra.mxu0 %v1246
      %v1332 = vpop.f32.mrf.mxu0
      %v1333 = vadd.f32 0.0, %v1332
      %v1334 = vpop.f32.mrf.mxu0
      %v1335 = vadd.f32 0.0, %v1334
      %1336 = vmatmul.bf16.gmra.mxu0 %v1247
      %v1337 = vpop.f32.mrf.mxu0
      %v1338 = vadd.f32 0.0, %v1337
      %v1339 = vpop.f32.mrf.mxu0
      %v1340 = vadd.f32 0.0, %v1339
      %1341 = vmatmul.bf16.gmra.mxu0 %v1248
      %v1342 = vpop.f32.mrf.mxu0
      %v1343 = vadd.f32 0.0, %v1342
      %v1344 = vpop.f32.mrf.mxu0
      %v1345 = vadd.f32 0.0, %v1344
      %1346 = vmatmul.bf16.gmra.mxu0 %v1249
      %v1347 = vpop.f32.mrf.mxu0
      %v1348 = vadd.f32 0.0, %v1347
      %v1349 = vpop.f32.mrf.mxu0
      %v1350 = vadd.f32 0.0, %v1349
      %1351 = vmatmul.bf16.gmra.mxu0 %v1250
      %v1352 = vpop.f32.mrf.mxu0
      %v1353 = vadd.f32 0.0, %v1352
      %v1354 = vpop.f32.mrf.mxu0
      %v1355 = vadd.f32 0.0, %v1354
      %1356 = vmatmul.bf16.gmra.mxu0 %v1251
      %v1357 = vpop.f32.mrf.mxu0
      %v1358 = vadd.f32 0.0, %v1357
      %v1359 = vpop.f32.mrf.mxu0
      %v1360 = vadd.f32 0.0, %v1359
      %1361 = vmatmul.bf16.gmra.mxu0 %v1252
      %v1362 = vpop.f32.mrf.mxu0
      %v1363 = vadd.f32 0.0, %v1362
      %v1364 = vpop.f32.mrf.mxu0
      %v1365 = vadd.f32 0.0, %v1364
      %1366 = vdwg.mxu0
      %v1367 = vadd.f32 %v1133, %v1328
      %v1368 = vadd.f32 %v1134, %v1330
      %v1369 = vadd.f32 %v1135, %v1333
      %v1370 = vadd.f32 %v1136, %v1335
      %v1371 = vadd.f32 %v1137, %v1338
      %v1372 = vadd.f32 %v1138, %v1340
      %v1373 = vadd.f32 %v1139, %v1343
      %v1374 = vadd.f32 %v1140, %v1345
      %v1375 = vadd.f32 %v1141, %v1348
      %v1376 = vadd.f32 %v1142, %v1350
      %v1377 = vadd.f32 %v1143, %v1353
      %v1378 = vadd.f32 %v1144, %v1355
      %v1379 = vadd.f32 %v1145, %v1358
      %v1380 = vadd.f32 %v1146, %v1360
      %v1381 = vadd.f32 %v1147, %v1363
      %v1382 = vadd.f32 %v1148, %v1365
      %v1383 = vld [vmem:[%s2] sm:$0x1]
      %v1385 = vperm.slane %v1383, 0
      %v1387 = vadd.f32 %v1367, %v1385
      %v1388 = vadd.f32 %v1368, %v1385
      %v1389 = vadd.f32 %v1369, %v1385
      %v1390 = vadd.f32 %v1370, %v1385
      %v1391 = vadd.f32 %v1371, %v1385
      %v1392 = vadd.f32 %v1372, %v1385
      %v1393 = vadd.f32 %v1373, %v1385
      %v1394 = vadd.f32 %v1374, %v1385
      %v1395 = vadd.f32 %v1375, %v1385
      %v1396 = vadd.f32 %v1376, %v1385
      %v1397 = vadd.f32 %v1377, %v1385
      %v1398 = vadd.f32 %v1378, %v1385
      %v1399 = vadd.f32 %v1379, %v1385
      %v1400 = vadd.f32 %v1380, %v1385
      %v1401 = vadd.f32 %v1381, %v1385
      %v1402 = vadd.f32 %v1382, %v1385
      %v1403 = vtanh.pop %v1387
      %v1404 = vtanh.pop %v1388
      %v1405 = vtanh.pop %v1389
      %v1406 = vtanh.pop %v1390
      %v1407 = vtanh.pop %v1391
      %v1408 = vtanh.pop %v1392
      %v1409 = vtanh.pop %v1393
      %v1410 = vtanh.pop %v1394
      %v1411 = vtanh.pop %v1395
      %v1412 = vtanh.pop %v1396
      %v1413 = vtanh.pop %v1397
      %v1414 = vtanh.pop %v1398
      %v1415 = vtanh.pop %v1399
      %v1416 = vtanh.pop %v1400
      %v1417 = vtanh.pop %v1401
      %v1418 = vtanh.pop %v1402
      %v1419 = vpack.c.bf16 %v1404, %v1403
      %v1420 = vpack.c.bf16 %v1406, %v1405
      %v1421 = vpack.c.bf16 %v1408, %v1407
      %v1422 = vpack.c.bf16 %v1410, %v1409
      %v1423 = vpack.c.bf16 %v1412, %v1411
      %v1424 = vpack.c.bf16 %v1414, %v1413
      %v1425 = vpack.c.bf16 %v1416, %v1415
      %v1426 = vpack.c.bf16 %v1418, %v1417
      %v1427 = vld [vmem:[%s3] sm:$0xf]
      %v1428 = vld [vmem:[%s3 + $0x4] sm:$0xf]
      %v1429 = vld [vmem:[%s3 + $0x8] sm:$0xf]
      %v1430 = vld [vmem:[%s3 + $0xc] sm:$0xf]
      %v1431 = vld [vmem:[%s3 + $0x10] sm:$0xf]
      %v1432 = vld [vmem:[%s3 + $0x14] sm:$0xf]
      %v1433 = vld [vmem:[%s3 + $0x18] sm:$0xf]
      %v1434 = vld [vmem:[%s3 + $0x1c] sm:$0xf]
      %v1435 = vld [vmem:[%s3 + $0x20] sm:$0xf]
      %v1436 = vld [vmem:[%s3 + $0x24] sm:$0xf]
      %v1437 = vld [vmem:[%s3 + $0x28] sm:$0xf]
      %v1438 = vld [vmem:[%s3 + $0x2c] sm:$0xf]
      %v1439 = vld [vmem:[%s3 + $0x30] sm:$0xf]
      %v1440 = vld [vmem:[%s3 + $0x34] sm:$0xf]
      %v1441 = vld [vmem:[%s3 + $0x38] sm:$0xf]
      %v1442 = vld [vmem:[%s3 + $0x3c] sm:$0xf]
      %v1443 = vld [vmem:[%s4] sm:$0x1]
      %v1445 = vperm.slane %v1443, 0
      %v1463 = vunpack.c.l.b16 %v1427
      %v1464 = vunpack.c.l.b16 %v1428
      %v1465 = vunpack.c.l.b16 %v1429
      %v1466 = vunpack.c.l.b16 %v1430
      %v1467 = vunpack.c.l.b16 %v1431
      %v1468 = vunpack.c.l.b16 %v1432
      %v1469 = vunpack.c.l.b16 %v1433
      %v1470 = vunpack.c.l.b16 %v1434
      %v1471 = vunpack.c.l.b16 %v1435
      %v1472 = vunpack.c.l.b16 %v1436
      %v1473 = vunpack.c.l.b16 %v1437
      %v1474 = vunpack.c.l.b16 %v1438
      %v1475 = vunpack.c.l.b16 %v1439
      %v1476 = vunpack.c.l.b16 %v1440
      %v1477 = vunpack.c.l.b16 %v1441
      %v1478 = vunpack.c.l.b16 %v1442
      %v1479 = vpack.c.b16 %v1464, %v1463
      %v1480 = vpack.c.b16 %v1466, %v1465
      %v1481 = vpack.c.b16 %v1468, %v1467
      %v1482 = vpack.c.b16 %v1470, %v1469
      %v1483 = vpack.c.b16 %v1472, %v1471
      %v1484 = vpack.c.b16 %v1474, %v1473
      %v1485 = vpack.c.b16 %v1476, %v1475
      %v1486 = vpack.c.b16 %v1478, %v1477
      %1495 = vmatpush.bf16.msra.mxu0 %v1486
      %1496 = vmatpush.bf16.msra.mxu0 %v1485
      %1497 = vmatpush.bf16.msra.mxu0 %v1484
      %1498 = vmatpush.bf16.msra.mxu0 %v1483
      %1499 = vmatpush.bf16.msra.mxu0 %v1482
      %1500 = vmatpush.bf16.msra.mxu0 %v1481
      %1501 = vmatpush.bf16.msra.mxu0 %v1480
      %1502 = vmatpush.bf16.msra.mxu0 %v1479
      %1503 = vmatmul.bf16.gmra.mxu0 %v1419
      %v1504 = vpop.f32.mrf.mxu0
      %v1505 = vadd.f32 %v1445, %v1504
      %v1506 = vpop.f32.mrf.mxu0
      %v1507 = vadd.f32 %v1445, %v1506
      %1508 = vmatmul.bf16.gmra.mxu0 %v1420
      %v1509 = vpop.f32.mrf.mxu0
      %v1510 = vadd.f32 %v1445, %v1509
      %v1511 = vpop.f32.mrf.mxu0
      %v1512 = vadd.f32 %v1445, %v1511
      %1513 = vmatmul.bf16.gmra.mxu0 %v1421
      %v1514 = vpop.f32.mrf.mxu0
      %v1515 = vadd.f32 %v1445, %v1514
      %v1516 = vpop.f32.mrf.mxu0
      %v1517 = vadd.f32 %v1445, %v1516
      %1518 = vmatmul.bf16.gmra.mxu0 %v1422
      %v1519 = vpop.f32.mrf.mxu0
      %v1520 = vadd.f32 %v1445, %v1519
      %v1521 = vpop.f32.mrf.mxu0
      %v1522 = vadd.f32 %v1445, %v1521
      %1523 = vmatmul.bf16.gmra.mxu0 %v1423
      %v1524 = vpop.f32.mrf.mxu0
      %v1525 = vadd.f32 %v1445, %v1524
      %v1526 = vpop.f32.mrf.mxu0
      %v1527 = vadd.f32 %v1445, %v1526
      %1528 = vmatmul.bf16.gmra.mxu0 %v1424
      %v1529 = vpop.f32.mrf.mxu0
      %v1530 = vadd.f32 %v1445, %v1529
      %v1531 = vpop.f32.mrf.mxu0
      %v1532 = vadd.f32 %v1445, %v1531
      %1533 = vmatmul.bf16.gmra.mxu0 %v1425
      %v1534 = vpop.f32.mrf.mxu0
      %v1535 = vadd.f32 %v1445, %v1534
      %v1536 = vpop.f32.mrf.mxu0
      %v1537 = vadd.f32 %v1445, %v1536
      %1538 = vmatmul.bf16.gmra.mxu0 %v1426
      %v1539 = vpop.f32.mrf.mxu0
      %v1540 = vadd.f32 %v1445, %v1539
      %v1541 = vpop.f32.mrf.mxu0
      %v1542 = vadd.f32 %v1445, %v1541
      %1543 = vdwg.mxu0
      %vm1544 = vcmask 64512
      %v1545 = vsel %vm1544, %v1505, -inf
      %1546 = vmax.xlane.f32.xlu0 %v1545
      %v1547 = vpop.xlane.xlu0 %1546
      %v1548 = vsel %vm1544, %v1507, -inf
      %1549 = vmax.xlane.f32.xlu0 %v1548
      %v1550 = vpop.xlane.xlu0 %1549
      %v1551 = vsel %vm1544, %v1510, -inf
      %1552 = vmax.xlane.f32.xlu0 %v1551
      %v1553 = vpop.xlane.xlu0 %1552
      %v1554 = vsel %vm1544, %v1512, -inf
      %1555 = vmax.xlane.f32.xlu0 %v1554
      %v1556 = vpop.xlane.xlu0 %1555
      %v1557 = vsel %vm1544, %v1515, -inf
      %1558 = vmax.xlane.f32.xlu0 %v1557
      %v1559 = vpop.xlane.xlu0 %1558
      %v1560 = vsel %vm1544, %v1517, -inf
      %1561 = vmax.xlane.f32.xlu0 %v1560
      %v1562 = vpop.xlane.xlu0 %1561
      %v1563 = vsel %vm1544, %v1520, -inf
      %1564 = vmax.xlane.f32.xlu0 %v1563
      %v1565 = vpop.xlane.xlu0 %1564
      %v1566 = vsel %vm1544, %v1522, -inf
      %1567 = vmax.xlane.f32.xlu0 %v1566
      %v1568 = vpop.xlane.xlu0 %1567
      %v1569 = vsel %vm1544, %v1525, -inf
      %1570 = vmax.xlane.f32.xlu0 %v1569
      %v1571 = vpop.xlane.xlu0 %1570
      %v1572 = vsel %vm1544, %v1527, -inf
      %1573 = vmax.xlane.f32.xlu0 %v1572
      %v1574 = vpop.xlane.xlu0 %1573
      %v1575 = vsel %vm1544, %v1530, -inf
      %1576 = vmax.xlane.f32.xlu0 %v1575
      %v1577 = vpop.xlane.xlu0 %1576
      %v1578 = vsel %vm1544, %v1532, -inf
      %1579 = vmax.xlane.f32.xlu0 %v1578
      %v1580 = vpop.xlane.xlu0 %1579
      %v1581 = vsel %vm1544, %v1535, -inf
      %1582 = vmax.xlane.f32.xlu0 %v1581
      %v1583 = vpop.xlane.xlu0 %1582
      %v1584 = vsel %vm1544, %v1537, -inf
      %1585 = vmax.xlane.f32.xlu0 %v1584
      %v1586 = vpop.xlane.xlu0 %1585
      %v1587 = vsel %vm1544, %v1540, -inf
      %1588 = vmax.xlane.f32.xlu0 %v1587
      %v1589 = vpop.xlane.xlu0 %1588
      %v1590 = vsel %vm1544, %v1542, -inf
      %1591 = vmax.xlane.f32.xlu0 %v1590
      %v1592 = vpop.xlane.xlu0 %1591
      %v1593 = vsub.f32 %v1505, %v1547
      %v1594 = vsub.f32 %v1507, %v1550
      %v1595 = vsub.f32 %v1510, %v1553
      %v1596 = vsub.f32 %v1512, %v1556
      %v1597 = vsub.f32 %v1515, %v1559
      %v1598 = vsub.f32 %v1517, %v1562
      %v1599 = vsub.f32 %v1520, %v1565
      %v1600 = vsub.f32 %v1522, %v1568
      %v1601 = vsub.f32 %v1525, %v1571
      %v1602 = vsub.f32 %v1527, %v1574
      %v1603 = vsub.f32 %v1530, %v1577
      %v1604 = vsub.f32 %v1532, %v1580
      %v1605 = vsub.f32 %v1535, %v1583
      %v1606 = vsub.f32 %v1537, %v1586
      %v1607 = vsub.f32 %v1540, %v1589
      %v1608 = vsub.f32 %v1542, %v1592
      %v1609 = vmul.f32 %v1593, 1.442695
      %v1610 = vpow.pop %v1609
      %v1611 = vmul.f32 %v1594, 1.442695
      %v1612 = vpow.pop %v1611
      %v1613 = vmul.f32 %v1595, 1.442695
      %v1614 = vpow.pop %v1613
      %v1615 = vmul.f32 %v1596, 1.442695
      %v1616 = vpow.pop %v1615
      %v1617 = vmul.f32 %v1597, 1.442695
      %v1618 = vpow.pop %v1617
      %v1619 = vmul.f32 %v1598, 1.442695
      %v1620 = vpow.pop %v1619
      %v1621 = vmul.f32 %v1599, 1.442695
      %v1622 = vpow.pop %v1621
      %v1623 = vmul.f32 %v1600, 1.442695
      %v1624 = vpow.pop %v1623
      %v1625 = vmul.f32 %v1601, 1.442695
      %v1626 = vpow.pop %v1625
      %v1627 = vmul.f32 %v1602, 1.442695
      %v1628 = vpow.pop %v1627
      %v1629 = vmul.f32 %v1603, 1.442695
      %v1630 = vpow.pop %v1629
      %v1631 = vmul.f32 %v1604, 1.442695
      %v1632 = vpow.pop %v1631
      %v1633 = vmul.f32 %v1605, 1.442695
      %v1634 = vpow.pop %v1633
      %v1635 = vmul.f32 %v1606, 1.442695
      %v1636 = vpow.pop %v1635
      %v1637 = vmul.f32 %v1607, 1.442695
      %v1638 = vpow.pop %v1637
      %v1639 = vmul.f32 %v1608, 1.442695
      %v1640 = vpow.pop %v1639
      %v1641 = vsel %vm1544, %v1610, 0.0
      %1642 = vadd.xlane.f32.xlu0 %v1641
      %v1643 = vpop.xlane.xlu0 %1642
      %v1644 = vsel %vm1544, %v1612, 0.0
      %1645 = vadd.xlane.f32.xlu0 %v1644
      %v1646 = vpop.xlane.xlu0 %1645
      %v1647 = vsel %vm1544, %v1614, 0.0
      %1648 = vadd.xlane.f32.xlu0 %v1647
      %v1649 = vpop.xlane.xlu0 %1648
      %v1650 = vsel %vm1544, %v1616, 0.0
      %1651 = vadd.xlane.f32.xlu0 %v1650
      %v1652 = vpop.xlane.xlu0 %1651
      %v1653 = vsel %vm1544, %v1618, 0.0
      %1654 = vadd.xlane.f32.xlu0 %v1653
      %v1655 = vpop.xlane.xlu0 %1654
      %v1656 = vsel %vm1544, %v1620, 0.0
      %1657 = vadd.xlane.f32.xlu0 %v1656
      %v1658 = vpop.xlane.xlu0 %1657
      %v1659 = vsel %vm1544, %v1622, 0.0
      %1660 = vadd.xlane.f32.xlu0 %v1659
      %v1661 = vpop.xlane.xlu0 %1660
      %v1662 = vsel %vm1544, %v1624, 0.0
      %1663 = vadd.xlane.f32.xlu0 %v1662
      %v1664 = vpop.xlane.xlu0 %1663
      %v1665 = vsel %vm1544, %v1626, 0.0
      %1666 = vadd.xlane.f32.xlu0 %v1665
      %v1667 = vpop.xlane.xlu0 %1666
      %v1668 = vsel %vm1544, %v1628, 0.0
      %1669 = vadd.xlane.f32.xlu0 %v1668
      %v1670 = vpop.xlane.xlu0 %1669
      %v1671 = vsel %vm1544, %v1630, 0.0
      %1672 = vadd.xlane.f32.xlu0 %v1671
      %v1673 = vpop.xlane.xlu0 %1672
      %v1674 = vsel %vm1544, %v1632, 0.0
      %1675 = vadd.xlane.f32.xlu0 %v1674
      %v1676 = vpop.xlane.xlu0 %1675
      %v1677 = vsel %vm1544, %v1634, 0.0
      %1678 = vadd.xlane.f32.xlu0 %v1677
      %v1679 = vpop.xlane.xlu0 %1678
      %v1680 = vsel %vm1544, %v1636, 0.0
      %1681 = vadd.xlane.f32.xlu0 %v1680
      %v1682 = vpop.xlane.xlu0 %1681
      %v1683 = vsel %vm1544, %v1638, 0.0
      %1684 = vadd.xlane.f32.xlu0 %v1683
      %v1685 = vpop.xlane.xlu0 %1684
      %v1686 = vsel %vm1544, %v1640, 0.0
      %1687 = vadd.xlane.f32.xlu0 %v1686
      %v1688 = vpop.xlane.xlu0 %1687
      %v1689 = vrcp.pop %v1643
      %v1690 = vrcp.pop %v1646
      %v1691 = vrcp.pop %v1649
      %v1692 = vrcp.pop %v1652
      %v1693 = vrcp.pop %v1655
      %v1694 = vrcp.pop %v1658
      %v1695 = vrcp.pop %v1661
      %v1696 = vrcp.pop %v1664
      %v1697 = vrcp.pop %v1667
      %v1698 = vrcp.pop %v1670
      %v1699 = vrcp.pop %v1673
      %v1700 = vrcp.pop %v1676
      %v1701 = vrcp.pop %v1679
      %v1702 = vrcp.pop %v1682
      %v1703 = vrcp.pop %v1685
      %v1704 = vrcp.pop %v1688
      %v1705 = vmul.f32 %v1610, %v1689
      %v1706 = vmul.f32 %v1612, %v1690
      %v1707 = vmul.f32 %v1614, %v1691
      %v1708 = vmul.f32 %v1616, %v1692
      %v1709 = vmul.f32 %v1618, %v1693
      %v1710 = vmul.f32 %v1620, %v1694
      %v1711 = vmul.f32 %v1622, %v1695
      %v1712 = vmul.f32 %v1624, %v1696
      %v1713 = vmul.f32 %v1626, %v1697
      %v1714 = vmul.f32 %v1628, %v1698
      %v1715 = vmul.f32 %v1630, %v1699
      %v1716 = vmul.f32 %v1632, %v1700
      %v1717 = vmul.f32 %v1634, %v1701
      %v1718 = vmul.f32 %v1636, %v1702
      %v1719 = vmul.f32 %v1638, %v1703
      %v1720 = vmul.f32 %v1640, %v1704
      %1721 = vst.msk [vmem:[%s226] sm:$0xff] %vm1544, %v1705
      %1722 = vst.msk [vmem:[%s226 + $0x8] sm:$0xff] %vm1544, %v1706
      %1723 = vst.msk [vmem:[%s226 + $0x10] sm:$0xff] %vm1544, %v1707
      %1724 = vst.msk [vmem:[%s226 + $0x18] sm:$0xff] %vm1544, %v1708
      %1725 = vst.msk [vmem:[%s226 + $0x20] sm:$0xff] %vm1544, %v1709
      %1726 = vst.msk [vmem:[%s226 + $0x28] sm:$0xff] %vm1544, %v1710
      %1727 = vst.msk [vmem:[%s226 + $0x30] sm:$0xff] %vm1544, %v1711
      %1728 = vst.msk [vmem:[%s226 + $0x38] sm:$0xff] %vm1544, %v1712
      %1729 = vst.msk [vmem:[%s226 + $0x40] sm:$0xff] %vm1544, %v1713
      %1730 = vst.msk [vmem:[%s226 + $0x48] sm:$0xff] %vm1544, %v1714
      %1731 = vst.msk [vmem:[%s226 + $0x50] sm:$0xff] %vm1544, %v1715
      %1732 = vst.msk [vmem:[%s226 + $0x58] sm:$0xff] %vm1544, %v1716
      %1733 = vst.msk [vmem:[%s226 + $0x60] sm:$0xff] %vm1544, %v1717
      %1734 = vst.msk [vmem:[%s226 + $0x68] sm:$0xff] %vm1544, %v1718
      %1735 = vst.msk [vmem:[%s226 + $0x70] sm:$0xff] %vm1544, %v1719
      %1736 = vst.msk [vmem:[%s226 + $0x78] sm:$0xff] %vm1544, %v1720
      %s1737 = smul.u32 16, %s16
      %p1738 = scmp.lt.s32.totalorder %s1737, 31
      %s1739 = scalar_select %p1738, %s1737, 31
      %s1740 = smul.addr %s1739, 8
      %s1741 = scalar_lea.vmem %s5, %s1740
      // Predicated region
      $region41: #{tpu_custom_call.1} parent=39 // pred_check
        %p1742 = pneg %p144
      $region42: #{tpu_custom_call.1} parent=39 // pred_check_branch
        %1744 = sbr.rel (%p1742) target = $region44
      $region43: #{tpu_custom_call.1} parent=39 // pred_region
        %s1745 = smul.u32 16, %s16
      $region44: #{tpu_custom_call.1} parent=39 // pred_fallthru
        _
    $region40: #{tpu_custom_call.1} parent=5 // pred_fallthru
      _
    %p1746 = scmp.le.s32.totalorder 2, %s11
    // Predicated region
    $region45: #{tpu_custom_call.1} parent=5 // pred_check
      %p1747 = pneg %p1746
    $region46: #{tpu_custom_call.1} parent=5 // pred_check_branch
      %1749 = sbr.rel (%p1747) target = $region48
    $region47: #{tpu_custom_call.1} parent=5 // pred_region
      %s1750 = ssub.s32 %s11, 2
      // Predicated region
      $region49: #{tpu_custom_call.1} parent=47 // pred_check
        %p1751 = pneg %p150
      $region50: #{tpu_custom_call.1} parent=47 // pred_check_branch
        %1753 = sbr.rel (%p1751) target = $region52
      $region51: #{tpu_custom_call.1} parent=47 // pred_region
        %s1754 = smul.u32 16, %s17
        %p1755 = scmp.lt.s32.totalorder %s1754, 31
        %s1756 = scalar_select %p1755, %s1754, 31
        %s1757 = smul.addr %s1756, 8
        %s1758 = scalar_lea.vmem %s5, %s1757
      $region52: #{tpu_custom_call.1} parent=47 // pred_fallthru
        _
    $region48: #{tpu_custom_call.1} parent=5 // pred_fallthru
      _
  $region6: #{tpu_custom_call.1} parent=0 // loop_footer
    %s15 = sadd.s32 1, %s11
  $region7: #{tpu_custom_call.1} parent=0 // loop_footer_branch
    %10 = sbr.rel target = $region3
  $region8: #{tpu_custom_call.1} parent=0 // loop_exit
    _

</llo_original>
